<compile_context>
chip_gen: v6e
topology: v6e:2x2x1
jax: 0.10.0
libtpu: 0.0.40
codegen_flags: <defaults>
</compile_context>

<pallas_src>
import functools

import numpy as np
import jax
import jax.numpy as jnp
from jax import lax
from jax import image as jax_image
from jax.experimental import pallas as pl
from jax.experimental.pallas import tpu as pltpu


C1 = 128  # conv1 output channels (fixed by the module definition)


def _bilinear_matrix_np(n):
    """(2n, n) matrix for scale-2 bilinear upsample, align_corners=False."""
    m = np.zeros((2 * n, n), np.float32)
    for i in range(n):
        lo = max(i - 1, 0)
        hi = min(i + 1, n - 1)
        m[2 * i, lo] += 0.25
        m[2 * i, i] += 0.75
        m[2 * i + 1, i] += 0.75
        m[2 * i + 1, hi] += 0.25
    return m


def _im2col_3x3(x_nhwc):
    """(N,H,W,C) -> (N, H*W, 9*C) patches for a 3x3 / stride 1 / pad 1 conv."""
    N, H, W, C = x_nhwc.shape
    xp = jnp.pad(x_nhwc, ((0, 0), (1, 1), (1, 1), (0, 0)))
    cols = [xp[:, dy:dy + H, dx:dx + W, :] for dy in range(3) for dx in range(3)]
    return jnp.concatenate(cols, axis=-1).reshape(N, H * W, 9 * C)


def _fused_output_conv_kernel(x_ref, w1_ref, b1_ref, w2_ref, b2_ref,
                              ah_ref, awt_ref, o_ref):
    """NB images per step: conv1 -> conv2 -> bilinear x2, all staying in VMEM."""
    NB, HW, KP = x_ref.shape          # (images/step, H*W, 9*Cin)
    H = ah_ref.shape[1]
    W, W2 = awt_ref.shape             # W, 2W
    C = w1_ref.shape[1]               # 128

    # ---- conv1: one MXU matmul over all NB images' im2col patches ----------
    x = x_ref[...].reshape(NB * HW, KP)                              # free merge
    h = jnp.dot(x, w1_ref[...], preferred_element_type=jnp.float32)  # (NB*HW,128)
    h = h + b1_ref[...]               # bias add kept in f32 (v5e-friendly)

    # ---- conv2: one (NB*HW,128)@(128,9) matmul -> per-pixel tap scores,
    # then the 3x3 spatial combine is a tiny f32 shift-add on the VPU. -------
    p = jnp.dot(h.astype(jnp.bfloat16), w2_ref[...],
                preferred_element_type=jnp.float32)                  # (NB*HW, 9)
    p = p.reshape(NB, H, W, 9)

    # Zero halo ring == conv2's 'SAME' zero padding of the conv1 output
    # (p is linear in h, so padding p with zeros is equivalent).
    zrow = jnp.zeros((NB, 1, W, 9), jnp.float32)
    pz = jnp.concatenate([zrow, p, zrow], axis=1)                    # (NB,H+2,W,9)
    zcol = jnp.zeros((NB, H + 2, 1, 9), jnp.float32)
    pz = jnp.concatenate([zcol, pz, zcol], axis=2)                   # (NB,H+2,W+2,9)

    y = jnp.zeros((NB, H, W, 1), jnp.float32)
    for k in range(9):                # 9 static shifted adds over tiny arrays
        dy, dx = divmod(k, 3)
        y = y + lax.slice(pz, (0, dy, dx, k), (NB, dy + H, dx + W, k + 1))
    y = y.reshape(NB, H, W) + b2_ref[...]                            # (NB,H,W) f32

    # ---- bilinear x2 upsample ----------------------------------------------
    # W-side for all NB images in one matmul (M = NB*H, N = 2W lanes).
    z = jnp.dot(y.reshape(NB * H, W).astype(jnp.bfloat16), awt_ref[...],
                preferred_element_type=jnp.float32)                  # (NB*H, 2W)
    z = z.reshape(NB, H, W2).astype(jnp.bfloat16)
    ah = ah_ref[...]
    # H-side per image; result written straight into the (NB, 2H, 2W) block
    # (lane-dense whenever 2W is a multiple of 128 at production sizes).
    for n in range(NB):
        o_ref[n, :, :] = jnp.dot(ah, z[n],
                                 preferred_element_type=jnp.float32
                                 ).astype(o_ref.dtype)


def output_conv_fused(x_nhwc, w1, b1, w2, b2, *, images_per_step=None):
    """x_nhwc: (N,H,W,Cin) f32; weights in HWIO. Returns (N, 1, 2H, 2W) f32."""
    N, H, W, Cin = x_nhwc.shape
    HW = H * W

    # Batch several images per grid step (amortize ~0.35us/step overhead) while
    # keeping >= 2 grid steps when possible so v7x's two TCs both get work.
    if images_per_step is None:
        steps = 2 if N >= 2 else 1
        NB = -(-N // steps)
    else:
        NB = max(1, images_per_step)
        steps = -(-N // NB)
    n_pad = NB * steps
    xp = x_nhwc
    if n_pad != N:
        xp = jnp.concatenate(
            [xp, jnp.zeros((n_pad - N, H, W, Cin), x_nhwc.dtype)], axis=0)

    # TODO(synk): at large Cin/H, do the im2col in-kernel (1x input HBM reads)
    # and row-tile with a 1-row halo; fine at Cin=4 / 16x16 faces.
    x_col = _im2col_3x3(xp).astype(jnp.bfloat16)                 # (Npad, HW, 9*Cin)
    w1c = w1.reshape(9 * Cin, C1).astype(jnp.bfloat16)           # (9*Cin, 128)
    b1r = b1.reshape(1, C1).astype(jnp.float32)
    w2s = w2.reshape(9, C1).T.astype(jnp.bfloat16)               # (128, 9) tap-stacked
    b2m = b2.reshape(1, 1).astype(jnp.float32)
    a_h = jnp.asarray(_bilinear_matrix_np(H), jnp.bfloat16)      # (2H, H)
    a_wt = jnp.asarray(_bilinear_matrix_np(W).T, jnp.bfloat16)   # (W, 2W)

    out = pl.pallas_call(
        _fused_output_conv_kernel,
        out_shape=jax.ShapeDtypeStruct((n_pad, 2 * H, 2 * W), jnp.float32),
        grid=(steps,),
        in_specs=[
            pl.BlockSpec((NB, HW, 9 * Cin), lambda s: (s, 0, 0)),
            pl.BlockSpec((9 * Cin, C1), lambda s: (0, 0)),
            pl.BlockSpec((1, C1), lambda s: (0, 0)),
            pl.BlockSpec((C1, 9), lambda s: (0, 0)),
            pl.BlockSpec((1, 1), lambda s: (0, 0)),
            pl.BlockSpec((2 * H, H), lambda s: (0, 0)),
            pl.BlockSpec((W, 2 * W), lambda s: (0, 0)),
        ],
        out_specs=pl.BlockSpec((NB, 2 * H, 2 * W), lambda s: (s, 0, 0)),
        compiler_params=pltpu.CompilerParams(
            dimension_semantics=("parallel",),
            vmem_limit_bytes=48 * 1024 * 1024),   # stay well under v7x's 64 MiB
    )(x_col, w1c, b1r, w2s, b2m, a_h, a_wt)

    return out[:N].reshape(N, 1, 2 * H, 2 * W)


def init_output_conv_params(key, features):
    k1, k2, k3, k4 = jax.random.split(key, 4)
    s1 = 1.0 / (features * 9) ** 0.5
    s2 = 1.0 / (C1 * 9) ** 0.5
    return {
        "w1": jax.random.uniform(k1, (3, 3, features, C1), jnp.float32, -s1, s1),
        "b1": jax.random.uniform(k2, (C1,), jnp.float32, -s1, s1),
        "w2": jax.random.uniform(k3, (3, 3, C1, 1), jnp.float32, -s2, s2),
        "b2": jax.random.uniform(k4, (1,), jnp.float32, -s2, s2),
    }


@functools.partial(jax.jit, static_argnames=("batch_size",))
def output_conv_forward(params, x_nchw, to_process, batch_size):
    # TODO(synk): sparse face selection (`to_process`) unimplemented; dense pass.
    del to_process, batch_size
    x = jnp.transpose(x_nchw, (0, 2, 3, 1)).astype(jnp.float32)   # NCHW -> NHWC
    return output_conv_fused(x, params["w1"], params["b1"],
                             params["w2"], params["b2"])


def _reference_forward(params, x_nchw):
    """Pure-JAX dense reference (f32); upsample via jax.image.resize
    (matches PyTorch F.interpolate scale_factor=2, align_corners=False)."""
    dn = ("NCHW", "OIHW", "NCHW")
    w1 = jnp.transpose(params["w1"], (3, 2, 0, 1))
    w2 = jnp.transpose(params["w2"], (3, 2, 0, 1))
    h = lax.conv_general_dilated(x_nchw, w1, (1, 1), "SAME", dimension_numbers=dn)
    h = h + params["b1"][None, :, None, None]
    y = lax.conv_general_dilated(h, w2, (1, 1), "SAME", dimension_numbers=dn)
    y = y + params["b2"][None, :, None, None]
    N, C, H, W = y.shape
    return jax_image.resize(y, (N, C, 2 * H, 2 * W), method="bilinear")


if __name__ == "__main__":
    key = jax.random.PRNGKey(0)
    kp, kx = jax.random.split(key)

    batch, features, H, W = 2, 4, 16, 16
    params = init_output_conv_params(kp, features)
    x = jax.random.normal(kx, (batch, features, H, W), jnp.float32)
    to_process = jnp.arange(batch, dtype=jnp.int32)   # sparse metadata (passed through)

    out = output_conv_forward(params, x, to_process, batch)
    out = jax.block_until_ready(out)
    assert out.shape == (batch, 1, 2 * H, 2 * W), out.shape

    # bf16-tolerant correctness check against a dense f32 reference whose
    # upsample uses jax.image.resize (non-circular bilinear check).
    ref = _reference_forward(params, x)
    np.testing.assert_allclose(np.asarray(out), np.asarray(ref), atol=0.1)

    print("KERNEL_OK")
</pallas_src>

<mosaic_0001>
module attributes {stable_mosaic.version = 11 : i64} {
  func.func @_fused_output_conv_kernel(%arg0: i32, %arg1: memref<1x256x36xbf16, #tpu.memory_space<vmem>>, %arg2: memref<36x128xbf16, #tpu.memory_space<vmem>>, %arg3: memref<1x128xf32, #tpu.memory_space<vmem>>, %arg4: memref<128x9xbf16, #tpu.memory_space<vmem>>, %arg5: memref<1x1xf32, #tpu.memory_space<vmem>>, %arg6: memref<32x16xbf16, #tpu.memory_space<vmem>>, %arg7: memref<16x32xbf16, #tpu.memory_space<vmem>>, %arg8: memref<1x32x32xf32, #tpu.memory_space<vmem>>) attributes {dimension_semantics = [#tpu.dimension_semantics<parallel>], iteration_bounds = array<i64: 2>, scalar_prefetch = 0 : i64, scratch_operands = 0 : i64, tpu.core_type = #tpu.core_type<tc>, window_params = [{transform_indices = @transform_0, window_bounds = array<i64: 1, 256, 36>}, {pipeline_mode = #tpu.pipeline_mode<synchronous>, transform_indices = @transform_1, window_bounds = array<i64: 36, 128>}, {pipeline_mode = #tpu.pipeline_mode<synchronous>, transform_indices = @transform_2, window_bounds = array<i64: 1, 128>}, {pipeline_mode = #tpu.pipeline_mode<synchronous>, transform_indices = @transform_3, window_bounds = array<i64: 128, 9>}, {pipeline_mode = #tpu.pipeline_mode<synchronous>, transform_indices = @transform_4, window_bounds = array<i64: 1, 1>}, {pipeline_mode = #tpu.pipeline_mode<synchronous>, transform_indices = @transform_5, window_bounds = array<i64: 32, 16>}, {pipeline_mode = #tpu.pipeline_mode<synchronous>, transform_indices = @transform_6, window_bounds = array<i64: 16, 32>}, {transform_indices = @transform_7, window_bounds = array<i64: 1, 32, 32>}]} {
    %c0 = arith.constant 0 : index
    %c0_0 = arith.constant 0 : index
    %c0_1 = arith.constant 0 : index
    %0 = vector.load %arg1[%c0, %c0_0, %c0_1] : memref<1x256x36xbf16, #tpu.memory_space<vmem>>, vector<1x256x36xbf16>
    %1 = vector.shape_cast %0 : vector<1x256x36xbf16> to vector<256x36xbf16>
    %c0_2 = arith.constant 0 : index
    %c0_3 = arith.constant 0 : index
    %2 = vector.load %arg2[%c0_2, %c0_3] : memref<36x128xbf16, #tpu.memory_space<vmem>>, vector<36x128xbf16>
    %cst = arith.constant dense<0.000000e+00> : vector<256x128xf32>
    %3 = tpu.matmul %1, %2, %cst {dimension_numbers = #tpu.dot_dimension_numbers<[1], [0], [0], [1], [0, 0, 1, 1], [], []>} : vector<256x36xbf16>, vector<36x128xbf16>, vector<256x128xf32> -> vector<256x128xf32>
    %c0_4 = arith.constant 0 : index
    %c0_5 = arith.constant 0 : index
    %4 = vector.load %arg3[%c0_4, %c0_5] : memref<1x128xf32, #tpu.memory_space<vmem>>, vector<1x128xf32>
    %5 = vector.broadcast %4 : vector<1x128xf32> to vector<256x128xf32>
    %6 = arith.addf %3, %5 : vector<256x128xf32>
    %7 = arith.truncf %6 : vector<256x128xf32> to vector<256x128xbf16>
    %c0_6 = arith.constant 0 : index
    %c0_7 = arith.constant 0 : index
    %8 = vector.load %arg4[%c0_6, %c0_7] : memref<128x9xbf16, #tpu.memory_space<vmem>>, vector<128x9xbf16>
    %cst_8 = arith.constant dense<0.000000e+00> : vector<256x9xf32>
    %9 = tpu.matmul %7, %8, %cst_8 {dimension_numbers = #tpu.dot_dimension_numbers<[1], [0], [0], [1], [0, 0, 1, 1], [], []>} : vector<256x128xbf16>, vector<128x9xbf16>, vector<256x9xf32> -> vector<256x9xf32>
    %10 = vector.shape_cast %9 : vector<256x9xf32> to vector<1x16x16x9xf32>
    %cst_9 = arith.constant 0.000000e+00 : f32
    %11 = vector.broadcast %cst_9 : f32 to vector<1x1x16x9xf32>
    %12 = tpu.concatenate %11, %10, %11 in 1 : vector<1x1x16x9xf32>, vector<1x16x16x9xf32>, vector<1x1x16x9xf32> -> vector<1x18x16x9xf32>
    %cst_10 = arith.constant 0.000000e+00 : f32
    %13 = vector.broadcast %cst_10 : f32 to vector<1x18x1x9xf32>
    %14 = tpu.concatenate %13, %12, %13 in 2 : vector<1x18x1x9xf32>, vector<1x18x16x9xf32>, vector<1x18x1x9xf32> -> vector<1x18x18x9xf32>
    %cst_11 = arith.constant 0.000000e+00 : f32
    %15 = vector.broadcast %cst_11 : f32 to vector<1x16x16x1xf32>
    %16 = vector.extract_strided_slice %14 {offsets = [0, 0, 0, 0], sizes = [1, 16, 16, 1], strides = [1, 1, 1, 1]} : vector<1x18x18x9xf32> to vector<1x16x16x1xf32>
    %17 = arith.addf %15, %16 : vector<1x16x16x1xf32>
    %18 = vector.extract_strided_slice %14 {offsets = [0, 0, 1, 1], sizes = [1, 16, 16, 1], strides = [1, 1, 1, 1]} : vector<1x18x18x9xf32> to vector<1x16x16x1xf32>
    %19 = arith.addf %17, %18 : vector<1x16x16x1xf32>
    %20 = vector.extract_strided_slice %14 {offsets = [0, 0, 2, 2], sizes = [1, 16, 16, 1], strides = [1, 1, 1, 1]} : vector<1x18x18x9xf32> to vector<1x16x16x1xf32>
    %21 = arith.addf %19, %20 : vector<1x16x16x1xf32>
    %22 = vector.extract_strided_slice %14 {offsets = [0, 1, 0, 3], sizes = [1, 16, 16, 1], strides = [1, 1, 1, 1]} : vector<1x18x18x9xf32> to vector<1x16x16x1xf32>
    %23 = arith.addf %21, %22 : vector<1x16x16x1xf32>
    %24 = vector.extract_strided_slice %14 {offsets = [0, 1, 1, 4], sizes = [1, 16, 16, 1], strides = [1, 1, 1, 1]} : vector<1x18x18x9xf32> to vector<1x16x16x1xf32>
    %25 = arith.addf %23, %24 : vector<1x16x16x1xf32>
    %26 = vector.extract_strided_slice %14 {offsets = [0, 1, 2, 5], sizes = [1, 16, 16, 1], strides = [1, 1, 1, 1]} : vector<1x18x18x9xf32> to vector<1x16x16x1xf32>
    %27 = arith.addf %25, %26 : vector<1x16x16x1xf32>
    %28 = vector.extract_strided_slice %14 {offsets = [0, 2, 0, 6], sizes = [1, 16, 16, 1], strides = [1, 1, 1, 1]} : vector<1x18x18x9xf32> to vector<1x16x16x1xf32>
    %29 = arith.addf %27, %28 : vector<1x16x16x1xf32>
    %30 = vector.extract_strided_slice %14 {offsets = [0, 2, 1, 7], sizes = [1, 16, 16, 1], strides = [1, 1, 1, 1]} : vector<1x18x18x9xf32> to vector<1x16x16x1xf32>
    %31 = arith.addf %29, %30 : vector<1x16x16x1xf32>
    %32 = vector.extract_strided_slice %14 {offsets = [0, 2, 2, 8], sizes = [1, 16, 16, 1], strides = [1, 1, 1, 1]} : vector<1x18x18x9xf32> to vector<1x16x16x1xf32>
    %33 = arith.addf %31, %32 : vector<1x16x16x1xf32>
    %34 = vector.shape_cast %33 : vector<1x16x16x1xf32> to vector<1x16x16xf32>
    %c0_12 = arith.constant 0 : index
    %c0_13 = arith.constant 0 : index
    %35 = vector.load %arg5[%c0_12, %c0_13] : memref<1x1xf32, #tpu.memory_space<vmem>>, vector<1x1xf32>
    %36 = vector.shape_cast %35 : vector<1x1xf32> to vector<1x1x1xf32>
    %37 = vector.broadcast %36 : vector<1x1x1xf32> to vector<1x16x16xf32>
    %38 = arith.addf %34, %37 : vector<1x16x16xf32>
    %39 = vector.shape_cast %38 : vector<1x16x16xf32> to vector<16x16xf32>
    %40 = arith.truncf %39 : vector<16x16xf32> to vector<16x16xbf16>
    %c0_14 = arith.constant 0 : index
    %c0_15 = arith.constant 0 : index
    %41 = vector.load %arg7[%c0_14, %c0_15] : memref<16x32xbf16, #tpu.memory_space<vmem>>, vector<16x32xbf16>
    %cst_16 = arith.constant dense<0.000000e+00> : vector<16x32xf32>
    %42 = tpu.matmul %40, %41, %cst_16 {dimension_numbers = #tpu.dot_dimension_numbers<[1], [0], [0], [1], [0, 0, 1, 1], [], []>} : vector<16x16xbf16>, vector<16x32xbf16>, vector<16x32xf32> -> vector<16x32xf32>
    %43 = vector.shape_cast %42 : vector<16x32xf32> to vector<1x16x32xf32>
    %44 = arith.truncf %43 : vector<1x16x32xf32> to vector<1x16x32xbf16>
    %c0_17 = arith.constant 0 : index
    %c0_18 = arith.constant 0 : index
    %45 = vector.load %arg6[%c0_17, %c0_18] : memref<32x16xbf16, #tpu.memory_space<vmem>>, vector<32x16xbf16>
    %46 = vector.shape_cast %44 : vector<1x16x32xbf16> to vector<16x32xbf16>
    %cst_19 = arith.constant dense<0.000000e+00> : vector<32x32xf32>
    %47 = tpu.matmul %45, %46, %cst_19 {dimension_numbers = #tpu.dot_dimension_numbers<[1], [0], [0], [1], [0, 0, 1, 1], [], []>} : vector<32x16xbf16>, vector<16x32xbf16>, vector<32x32xf32> -> vector<32x32xf32>
    %c0_20 = arith.constant 0 : index
    %c0_21 = arith.constant 0 : index
    %c0_22 = arith.constant 0 : index
    %48 = vector.load %arg8[%c0_20, %c0_21, %c0_22] : memref<1x32x32xf32, #tpu.memory_space<vmem>>, vector<1x32x32xf32>
    %49 = vector.shape_cast %48 : vector<1x32x32xf32> to vector<32x32xf32>
    %50 = vector.shape_cast %47 : vector<32x32xf32> to vector<1x32x32xf32>
    tpu.vector_store %arg8[%c0_20, %c0_21, %c0_22], %50 {strides = array<i32>} : memref<1x32x32xf32, #tpu.memory_space<vmem>>, vector<1x32x32xf32>,
    return
  }
  func.func @transform_0(%arg0: i32) -> (i32, i32, i32) {
    %c0_i32 = arith.constant 0 : i32
    %c0_i32_0 = arith.constant 0 : i32
    %c0_i32_1 = arith.constant 0 : i32
    return %arg0, %c0_i32, %c0_i32_0 : i32, i32, i32
  }
  func.func @transform_1(%arg0: i32) -> (i32, i32) {
    %c0_i32 = arith.constant 0 : i32
    %c0_i32_0 = arith.constant 0 : i32
    %c0_i32_1 = arith.constant 0 : i32
    return %c0_i32, %c0_i32_0 : i32, i32
  }
  func.func @transform_2(%arg0: i32) -> (i32, i32) {
    %c0_i32 = arith.constant 0 : i32
    %c0_i32_0 = arith.constant 0 : i32
    %c0_i32_1 = arith.constant 0 : i32
    return %c0_i32, %c0_i32_0 : i32, i32
  }
  func.func @transform_3(%arg0: i32) -> (i32, i32) {
    %c0_i32 = arith.constant 0 : i32
    %c0_i32_0 = arith.constant 0 : i32
    %c0_i32_1 = arith.constant 0 : i32
    return %c0_i32, %c0_i32_0 : i32, i32
  }
  func.func @transform_4(%arg0: i32) -> (i32, i32) {
    %c0_i32 = arith.constant 0 : i32
    %c0_i32_0 = arith.constant 0 : i32
    %c0_i32_1 = arith.constant 0 : i32
    return %c0_i32, %c0_i32_0 : i32, i32
  }
  func.func @transform_5(%arg0: i32) -> (i32, i32) {
    %c0_i32 = arith.constant 0 : i32
    %c0_i32_0 = arith.constant 0 : i32
    %c0_i32_1 = arith.constant 0 : i32
    return %c0_i32, %c0_i32_0 : i32, i32
  }
  func.func @transform_6(%arg0: i32) -> (i32, i32) {
    %c0_i32 = arith.constant 0 : i32
    %c0_i32_0 = arith.constant 0 : i32
    %c0_i32_1 = arith.constant 0 : i32
    return %c0_i32, %c0_i32_0 : i32, i32
  }
  func.func @transform_7(%arg0: i32) -> (i32, i32, i32) {
    %c0_i32 = arith.constant 0 : i32
    %c0_i32_0 = arith.constant 0 : i32
    %c0_i32_1 = arith.constant 0 : i32
    return %arg0, %c0_i32, %c0_i32_0 : i32, i32, i32
  }
}

</mosaic_0001>

<llo_original>
// kernel: output_conv_forward.1
$region0: #{output_conv_forward.1}
  #allocation0 [shape = 'u32[]', space=smem, size = 0x4, offset = 0x4, fixed_abs, tag = 'smem constant byte address 0x4 - core index']
  #allocation1 [shape = 'u32[144,128]{1,0:T(1,128)}', space=vmem, size = 0x12000, scoped, tag = 'internal scratch']
  #allocation2 [shape = 'f32[1,1]{1,0:T(1,128)S(1)}', space=vmem, size = 0x200, scoped, tag = 'scoped memory for output_conv_forward.1']
  %s0 = inlined_call_operand.vmem [shape: bf16[2,256,36], index: 0, kind: input, shape index: {}]
  %s1 = inlined_call_operand.vmem [shape: bf16[36,128], index: 1, kind: input, shape index: {}]
  %s2 = inlined_call_operand.vmem [shape: f32[1,128], index: 2, kind: input, shape index: {}]
  %s3 = inlined_call_operand.vmem [shape: bf16[128,9], index: 3, kind: input, shape index: {}]
  %s4 = inlined_call_operand.<no memory space> [shape: f32[1,1], index: 4, kind: input, shape index: {}]
  %s5 = inlined_call_operand.vmem [shape: bf16[32,16], index: 5, kind: input, shape index: {}]
  %s6 = inlined_call_operand.vmem [shape: bf16[16,32], index: 6, kind: input, shape index: {}]
  %s7 = inlined_call_operand.hbm [shape: f32[2,32,32], index: 7, kind: output, shape index: {}]
  %s8 = sld [smem:[#allocation0]]
  $region61: #{output_conv_forward.1} parent=0
    _
  %s10 = ssub.s32 1, %s8
  %s11 = scalar_select 0, %s10, %s8
  %v12 = vstv %s4
  %13 = vst [vmem:[#allocation2] sm:$0x1] %v12
  $region1: #{output_conv_forward.1} parent=0
    #allocation3 [shape = 'u8[32768]{0}', space=vmem, size = 0x8000, scoped, tag = 'output window, operand 0']
    #allocation4 [shape = 's32[2]{0}', space=sflag, size = 0x8, scoped, tag = 'scoped memory for output_conv_forward.1']
    %14 = vsyncpa [#allocation4], 0
    %s15 = scalar_lea.sflag [#allocation4], 1
    %16 = vsyncpa %s15, 0
    loop: start=0, step=1, limit=4
    $region2: #{output_conv_forward.1} parent=1 // loop_pre_header
      _
    $region3: #{output_conv_forward.1} parent=1 // loop_header
      %s18 = sphi 0, %s22
      %p19 = scmp.ge.s32.totalorder %s18, 4
      %s28 = sphi 0, %s30
      %s31 = sphi 0, %s28
      %s32 = sphi 0, %s31
      %s48 = sphi 0, %s32
      %s52 = sphi 0, %s52
      %s54 = sphi 0, %s52
      %s55 = sphi 0, %s54
      %s69 = sphi 0, %s55
      %s73 = sphi 0, %s73
      %s75 = sphi 0, %s73
      %s76 = sphi 0, %s75
      %s90 = sphi 0, %s76
      %s94 = sphi 0, %s94
      %s96 = sphi 0, %s94
      %s97 = sphi 0, %s96
      %s111 = sphi 0, %s97
      %s115 = sphi 0, %s115
      %s117 = sphi 0, %s115
      %s118 = sphi 0, %s117
      %s132 = sphi 0, %s118
      %s136 = sphi 0, %s136
      %s138 = sphi 0, %s136
      %s139 = sphi 0, %s138
      %s153 = sphi 0, %s139
      %s157 = sphi 0, %s157
      %s159 = sphi 0, %s157
      %s160 = sphi 0, %s159
      %s174 = sphi 0, %s160
      %s180 = sphi 0, %s182
      %s183 = sphi 0, %s180
      %s184 = sphi 0, %s183
      %s200 = sphi 0, %s184
    $region4: #{output_conv_forward.1} parent=1 // loop_header_branch
      %21 = sbr.rel (%p19) target = $region8
    $region5: #{output_conv_forward.1} parent=1 // loop_body
      %s23 = ssub.s32 %s18, 1
      %s24 = ssub.s32 %s18, 2
      %s25 = sadd.s32 %s18, 1
      %s26 = ssub.s32 %s18, %s25
      %p27 = scmp.eq.s32.totalorder %s26, 0
      %s29 = sadd.s32 %s28, 1
      %s30 = scalar_select %p27, %s28, %s29
      %p33 = pneg %p27
      %p34 = scmp.eq.s32.totalorder %s18, 1
      %p35 = por %p33, %p34
      %p36 = scmp.ne.s32.totalorder %s28, %s31
      %p37 = scmp.eq.s32.totalorder %s18, 0
      %p38 = por %p36, %p37
      %p39 = scmp.ne.s32.totalorder %s28, %s31
      %p40 = scmp.eq.s32.totalorder %s23, 1
      %p41 = por %p39, %p40
      %p42 = scmp.ne.s32.totalorder %s31, %s32
      %p43 = scmp.eq.s32.totalorder %s23, 0
      %p44 = por %p42, %p43
      %p45 = scmp.ne.s32.totalorder %s31, %s32
      %p46 = scmp.eq.s32.totalorder %s24, 1
      %p47 = por %p45, %p46
      %p49 = scmp.ne.s32.totalorder %s32, %s48
      %p50 = scmp.eq.s32.totalorder %s24, 0
      %p51 = por %p49, %p50
      %s53 = sadd.s32 %s52, 1
      %p56 = scmp.eq.s32.totalorder %s18, 1
      %p57 = scmp.ne.s32.totalorder %s52, %s54
      %p58 = scmp.eq.s32.totalorder %s18, 0
      %p59 = por %p57, %p58
      %p60 = scmp.ne.s32.totalorder %s52, %s54
      %p61 = scmp.eq.s32.totalorder %s23, 1
      %p62 = por %p60, %p61
      %p63 = scmp.ne.s32.totalorder %s54, %s55
      %p64 = scmp.eq.s32.totalorder %s23, 0
      %p65 = por %p63, %p64
      %p66 = scmp.ne.s32.totalorder %s54, %s55
      %p67 = scmp.eq.s32.totalorder %s24, 1
      %p68 = por %p66, %p67
      %p70 = scmp.ne.s32.totalorder %s55, %s69
      %p71 = scmp.eq.s32.totalorder %s24, 0
      %p72 = por %p70, %p71
      %s74 = sadd.s32 %s73, 1
      %p77 = scmp.eq.s32.totalorder %s18, 1
      %p78 = scmp.ne.s32.totalorder %s73, %s75
      %p79 = scmp.eq.s32.totalorder %s18, 0
      %p80 = por %p78, %p79
      %p81 = scmp.ne.s32.totalorder %s73, %s75
      %p82 = scmp.eq.s32.totalorder %s23, 1
      %p83 = por %p81, %p82
      %p84 = scmp.ne.s32.totalorder %s75, %s76
      %p85 = scmp.eq.s32.totalorder %s23, 0
      %p86 = por %p84, %p85
      %p87 = scmp.ne.s32.totalorder %s75, %s76
      %p88 = scmp.eq.s32.totalorder %s24, 1
      %p89 = por %p87, %p88
      %p91 = scmp.ne.s32.totalorder %s76, %s90
      %p92 = scmp.eq.s32.totalorder %s24, 0
      %p93 = por %p91, %p92
      %s95 = sadd.s32 %s94, 1
      %p98 = scmp.eq.s32.totalorder %s18, 1
      %p99 = scmp.ne.s32.totalorder %s94, %s96
      %p100 = scmp.eq.s32.totalorder %s18, 0
      %p101 = por %p99, %p100
      %p102 = scmp.ne.s32.totalorder %s94, %s96
      %p103 = scmp.eq.s32.totalorder %s23, 1
      %p104 = por %p102, %p103
      %p105 = scmp.ne.s32.totalorder %s96, %s97
      %p106 = scmp.eq.s32.totalorder %s23, 0
      %p107 = por %p105, %p106
      %p108 = scmp.ne.s32.totalorder %s96, %s97
      %p109 = scmp.eq.s32.totalorder %s24, 1
      %p110 = por %p108, %p109
      %p112 = scmp.ne.s32.totalorder %s97, %s111
      %p113 = scmp.eq.s32.totalorder %s24, 0
      %p114 = por %p112, %p113
      %s116 = sadd.s32 %s115, 1
      %p119 = scmp.eq.s32.totalorder %s18, 1
      %p120 = scmp.ne.s32.totalorder %s115, %s117
      %p121 = scmp.eq.s32.totalorder %s18, 0
      %p122 = por %p120, %p121
      %p123 = scmp.ne.s32.totalorder %s115, %s117
      %p124 = scmp.eq.s32.totalorder %s23, 1
      %p125 = por %p123, %p124
      %p126 = scmp.ne.s32.totalorder %s117, %s118
      %p127 = scmp.eq.s32.totalorder %s23, 0
      %p128 = por %p126, %p127
      %p129 = scmp.ne.s32.totalorder %s117, %s118
      %p130 = scmp.eq.s32.totalorder %s24, 1
      %p131 = por %p129, %p130
      %p133 = scmp.ne.s32.totalorder %s118, %s132
      %p134 = scmp.eq.s32.totalorder %s24, 0
      %p135 = por %p133, %p134
      %s137 = sadd.s32 %s136, 1
      %p140 = scmp.eq.s32.totalorder %s18, 1
      %p141 = scmp.ne.s32.totalorder %s136, %s138
      %p142 = scmp.eq.s32.totalorder %s18, 0
      %p143 = por %p141, %p142
      %p144 = scmp.ne.s32.totalorder %s136, %s138
      %p145 = scmp.eq.s32.totalorder %s23, 1
      %p146 = por %p144, %p145
      %p147 = scmp.ne.s32.totalorder %s138, %s139
      %p148 = scmp.eq.s32.totalorder %s23, 0
      %p149 = por %p147, %p148
      %p150 = scmp.ne.s32.totalorder %s138, %s139
      %p151 = scmp.eq.s32.totalorder %s24, 1
      %p152 = por %p150, %p151
      %p154 = scmp.ne.s32.totalorder %s139, %s153
      %p155 = scmp.eq.s32.totalorder %s24, 0
      %p156 = por %p154, %p155
      %s158 = sadd.s32 %s157, 1
      %p161 = scmp.eq.s32.totalorder %s18, 1
      %p162 = scmp.ne.s32.totalorder %s157, %s159
      %p163 = scmp.eq.s32.totalorder %s18, 0
      %p164 = por %p162, %p163
      %p165 = scmp.ne.s32.totalorder %s157, %s159
      %p166 = scmp.eq.s32.totalorder %s23, 1
      %p167 = por %p165, %p166
      %p168 = scmp.ne.s32.totalorder %s159, %s160
      %p169 = scmp.eq.s32.totalorder %s23, 0
      %p170 = por %p168, %p169
      %p171 = scmp.ne.s32.totalorder %s159, %s160
      %p172 = scmp.eq.s32.totalorder %s24, 1
      %p173 = por %p171, %p172
      %p175 = scmp.ne.s32.totalorder %s160, %s174
      %p176 = scmp.eq.s32.totalorder %s24, 0
      %p177 = por %p175, %p176
      %s178 = ssub.s32 %s18, %s25
      %p179 = scmp.eq.s32.totalorder %s178, 0
      %s181 = sadd.s32 %s180, 1
      %s182 = scalar_select %p179, %s180, %s181
      %p185 = pneg %p179
      %p186 = scmp.eq.s32.totalorder %s18, 1
      %p187 = por %p185, %p186
      %p188 = scmp.ne.s32.totalorder %s180, %s183
      %p189 = scmp.eq.s32.totalorder %s18, 0
      %p190 = por %p188, %p189
      %p191 = scmp.ne.s32.totalorder %s180, %s183
      %p192 = scmp.eq.s32.totalorder %s23, 1
      %p193 = por %p191, %p192
      %p194 = scmp.ne.s32.totalorder %s183, %s184
      %p195 = scmp.eq.s32.totalorder %s23, 0
      %p196 = por %p194, %p195
      %p197 = scmp.ne.s32.totalorder %s183, %s184
      %p198 = scmp.eq.s32.totalorder %s24, 1
      %p199 = por %p197, %p198
      %p201 = scmp.ne.s32.totalorder %s184, %s200
      %p202 = scmp.eq.s32.totalorder %s24, 0
      %p203 = por %p201, %p202
      %p204 = scmp.le.s32.totalorder 1, %s18
      %p205 = scmp.lt.s32.totalorder %s18, 3
      %p206 = pnand %p204, %p205
      %p207 = pneg %p206
      // Predicated region
      $region9: #{output_conv_forward.1} parent=5 // pred_check
        _
      $region10: #{output_conv_forward.1} parent=5 // pred_check_branch
        %209 = sbr.rel (%p206) target = $region12
      $region11: #{output_conv_forward.1} parent=5 // pred_region
        %s210 = ssub.s32 %s18, 1
        // Predicated region
        $region13: #{output_conv_forward.1} parent=11 // pred_check
          %p211 = pneg %p65
        $region14: #{output_conv_forward.1} parent=11 // pred_check_branch
          %213 = sbr.rel (%p211) target = $region16
        $region15: #{output_conv_forward.1} parent=11 // pred_region
          _
        $region16: #{output_conv_forward.1} parent=11 // pred_fallthru
          _
        // Predicated region
        $region17: #{output_conv_forward.1} parent=11 // pred_check
          %p214 = pneg %p86
        $region18: #{output_conv_forward.1} parent=11 // pred_check_branch
          %216 = sbr.rel (%p214) target = $region20
        $region19: #{output_conv_forward.1} parent=11 // pred_region
          _
        $region20: #{output_conv_forward.1} parent=11 // pred_fallthru
          _
        // Predicated region
        $region21: #{output_conv_forward.1} parent=11 // pred_check
          %p217 = pneg %p107
        $region22: #{output_conv_forward.1} parent=11 // pred_check_branch
          %219 = sbr.rel (%p217) target = $region24
        $region23: #{output_conv_forward.1} parent=11 // pred_region
          _
        $region24: #{output_conv_forward.1} parent=11 // pred_fallthru
          _
        // Predicated region
        $region25: #{output_conv_forward.1} parent=11 // pred_check
          %p220 = pneg %p128
        $region26: #{output_conv_forward.1} parent=11 // pred_check_branch
          %222 = sbr.rel (%p220) target = $region28
        $region27: #{output_conv_forward.1} parent=11 // pred_region
          _
        $region28: #{output_conv_forward.1} parent=11 // pred_fallthru
          _
        // Predicated region
        $region29: #{output_conv_forward.1} parent=11 // pred_check
          %p223 = pneg %p149
        $region30: #{output_conv_forward.1} parent=11 // pred_check_branch
          %225 = sbr.rel (%p223) target = $region32
        $region31: #{output_conv_forward.1} parent=11 // pred_region
          _
        $region32: #{output_conv_forward.1} parent=11 // pred_fallthru
          _
        // Predicated region
        $region33: #{output_conv_forward.1} parent=11 // pred_check
          %p226 = pneg %p170
        $region34: #{output_conv_forward.1} parent=11 // pred_check_branch
          %228 = sbr.rel (%p226) target = $region36
        $region35: #{output_conv_forward.1} parent=11 // pred_region
          _
        $region36: #{output_conv_forward.1} parent=11 // pred_fallthru
          _
      $region12: #{output_conv_forward.1} parent=5 // pred_fallthru
        _
      %p229 = scmp.lt.s32.totalorder %s18, 2
      // Predicated region
      $region37: #{output_conv_forward.1} parent=5 // pred_check
        %p230 = pneg %p229
      $region38: #{output_conv_forward.1} parent=5 // pred_check_branch
        %232 = sbr.rel (%p230) target = $region40
      $region39: #{output_conv_forward.1} parent=5 // pred_region
        // Predicated region
        $region41: #{output_conv_forward.1} parent=39 // pred_check
          %p233 = pneg %p38
        $region42: #{output_conv_forward.1} parent=39 // pred_check_branch
          %235 = sbr.rel (%p233) target = $region44
        $region43: #{output_conv_forward.1} parent=39 // pred_region
          %p236 = scmp.lt.s32.totalorder %s18, 1
          %s237 = scalar_select %p236, %s18, 1
          %s238 = smul.addr %s237, 32
          %s239 = smul.addr %s238, 4
          %s240 = scalar_lea.vmem %s0, %s239
        $region44: #{output_conv_forward.1} parent=39 // pred_fallthru
          _
      $region40: #{output_conv_forward.1} parent=5 // pred_fallthru
        _
      %p241 = scmp.le.s32.totalorder 1, %s18
      %p242 = scmp.lt.s32.totalorder %s18, 3
      %p243 = pnand %p241, %p242
      %p244 = pneg %p243
      // Predicated region
      $region45: #{output_conv_forward.1} parent=5 // pred_check
        _
      $region46: #{output_conv_forward.1} parent=5 // pred_check_branch
        %246 = sbr.rel (%p243) target = $region48
      $region47: #{output_conv_forward.1} parent=5 // pred_region
        %s247 = ssub.s32 %s18, 1
        %p248 = scmp.lt.s32.totalorder %s23, 1
        %s249 = scalar_select %p248, %s23, 1
        %s250 = smul.addr %s249, 32
        %s251 = smul.addr %s250, 4
        %s252 = scalar_lea.vmem %s0, %s251
        %p253 = pneg %p44
        %p254 = pneg %p41
        %p255 = pneg %p65
        %p256 = pneg %p62
        %p257 = pneg %p86
        %p258 = pneg %p83
        %p259 = pneg %p107
        %p260 = pneg %p104
        %p261 = pneg %p128
        %p262 = pneg %p125
        %p263 = pneg %p149
        %p264 = pneg %p146
        %p265 = pneg %p170
        %p266 = pneg %p167
        %p267 = pneg %p196
        %p268 = pneg %p193
        %s269 = sand.u32 %s183, 1
        %s270 = scalar_lea.sflag [#allocation4], %s269
        %s271 = sand.u32 %s183, 1
        %s272 = smul.addr %s271, 32
        %s273 = scalar_lea.vmem [#allocation3], %s272
        %p274 = scmp.lt.s32.totalorder %s23, 1
        %s275 = scalar_select %p274, %s23, 1
        %s276 = smul.addr %s275, 32
        %s277 = smul.addr %s276, 4
        %s278 = scalar_lea.vmem %s0, %s277
        %v280 = vld [vmem:[%s278] sm:$0xf]
        %v281 = vld [vmem:[%s278 + $0x4] sm:$0xf]
        %v282 = vld [vmem:[%s278 + $0x8] sm:$0xf]
        %v283 = vld [vmem:[%s278 + $0xc] sm:$0xf]
        %v284 = vld [vmem:[%s278 + $0x10] sm:$0xf]
        %v285 = vld [vmem:[%s278 + $0x14] sm:$0xf]
        %v286 = vld [vmem:[%s278 + $0x18] sm:$0xf]
        %v287 = vld [vmem:[%s278 + $0x1c] sm:$0xf]
        %v288 = vld [vmem:[%s278 + $0x20] sm:$0xf]
        %v289 = vld [vmem:[%s278 + $0x24] sm:$0xf]
        %v290 = vld [vmem:[%s278 + $0x28] sm:$0xf]
        %v291 = vld [vmem:[%s278 + $0x2c] sm:$0xf]
        %v292 = vld [vmem:[%s278 + $0x30] sm:$0xf]
        %v293 = vld [vmem:[%s278 + $0x34] sm:$0xf]
        %v294 = vld [vmem:[%s278 + $0x38] sm:$0xf]
        %v295 = vld [vmem:[%s278 + $0x3c] sm:$0xf]
        %v296 = vld [vmem:[%s278 + $0x40] sm:$0xf]
        %v297 = vld [vmem:[%s278 + $0x44] sm:$0xf]
        %v298 = vld [vmem:[%s278 + $0x48] sm:$0xf]
        %v299 = vld [vmem:[%s278 + $0x4c] sm:$0xf]
        %v300 = vld [vmem:[%s278 + $0x50] sm:$0xf]
        %v301 = vld [vmem:[%s278 + $0x54] sm:$0xf]
        %v302 = vld [vmem:[%s278 + $0x58] sm:$0xf]
        %v303 = vld [vmem:[%s278 + $0x5c] sm:$0xf]
        %v304 = vld [vmem:[%s278 + $0x60] sm:$0xf]
        %v305 = vld [vmem:[%s278 + $0x64] sm:$0xf]
        %v306 = vld [vmem:[%s278 + $0x68] sm:$0xf]
        %v307 = vld [vmem:[%s278 + $0x6c] sm:$0xf]
        %v308 = vld [vmem:[%s278 + $0x70] sm:$0xf]
        %v309 = vld [vmem:[%s278 + $0x74] sm:$0xf]
        %v310 = vld [vmem:[%s278 + $0x78] sm:$0xf]
        %v311 = vld [vmem:[%s278 + $0x7c] sm:$0xf]
        %v312 = vld [vmem:[%s1] sm:$0xf]
        %v313 = vld [vmem:[%s1 + $0x4] sm:$0xf]
        %v314 = vld [vmem:[%s1 + $0x8] sm:$0xf]
        %v315 = vld [vmem:[%s1 + $0xc] sm:$0xf]
        %v316 = vld [vmem:[%s1 + $0x10] sm:$0x3]
        %v317 = vld [vmem:[%s2] sm:$0x1]
        %v319 = vlaneseq
        %v320 = vshrl.u32 %v319, 7
        %v321 = vsub.s32 0, %v320
        %v322 = vrot.slane %v317, %v321
        %v356 = vunpack.c.l.b16 %v280
        %v357 = vunpack.c.l.b16 %v281
        %v358 = vunpack.c.l.b16 %v282
        %v359 = vunpack.c.l.b16 %v283
        %v360 = vunpack.c.l.b16 %v284
        %v361 = vunpack.c.l.b16 %v285
        %v362 = vunpack.c.l.b16 %v286
        %v363 = vunpack.c.l.b16 %v287
        %v364 = vunpack.c.l.b16 %v288
        %v365 = vunpack.c.l.b16 %v289
        %v366 = vunpack.c.l.b16 %v290
        %v367 = vunpack.c.l.b16 %v291
        %v368 = vunpack.c.l.b16 %v292
        %v369 = vunpack.c.l.b16 %v293
        %v370 = vunpack.c.l.b16 %v294
        %v371 = vunpack.c.l.b16 %v295
        %v372 = vunpack.c.l.b16 %v296
        %v373 = vunpack.c.l.b16 %v297
        %v374 = vunpack.c.l.b16 %v298
        %v375 = vunpack.c.l.b16 %v299
        %v376 = vunpack.c.l.b16 %v300
        %v377 = vunpack.c.l.b16 %v301
        %v378 = vunpack.c.l.b16 %v302
        %v379 = vunpack.c.l.b16 %v303
        %v380 = vunpack.c.l.b16 %v304
        %v381 = vunpack.c.l.b16 %v305
        %v382 = vunpack.c.l.b16 %v306
        %v383 = vunpack.c.l.b16 %v307
        %v384 = vunpack.c.l.b16 %v308
        %v385 = vunpack.c.l.b16 %v309
        %v386 = vunpack.c.l.b16 %v310
        %v387 = vunpack.c.l.b16 %v311
        %v388 = vpack.c.b16 %v357, %v356
        %v389 = vpack.c.b16 %v359, %v358
        %v390 = vpack.c.b16 %v361, %v360
        %v391 = vpack.c.b16 %v363, %v362
        %v392 = vpack.c.b16 %v365, %v364
        %v393 = vpack.c.b16 %v367, %v366
        %v394 = vpack.c.b16 %v369, %v368
        %v395 = vpack.c.b16 %v371, %v370
        %v396 = vpack.c.b16 %v373, %v372
        %v397 = vpack.c.b16 %v375, %v374
        %v398 = vpack.c.b16 %v377, %v376
        %v399 = vpack.c.b16 %v379, %v378
        %v400 = vpack.c.b16 %v381, %v380
        %v401 = vpack.c.b16 %v383, %v382
        %v402 = vpack.c.b16 %v385, %v384
        %v403 = vpack.c.b16 %v387, %v386
        %v409 = vunpack.c.l.b16 %v312
        %v410 = vunpack.c.l.b16 %v313
        %v411 = vunpack.c.l.b16 %v314
        %v412 = vunpack.c.l.b16 %v315
        %v413 = vunpack.c.l.b16 %v316
        %v414 = vpack.c.b16 %v410, %v409
        %v415 = vpack.c.b16 %v412, %v411
        %v416 = vpack.c.b16 %v413, %v413
        %vm419 = vcmask 293888
        %v421 = vsel %vm419, %v388, 0
        %v424 = vsel %vm419, %v389, 0
        %v427 = vsel %vm419, %v390, 0
        %v430 = vsel %vm419, %v391, 0
        %v433 = vsel %vm419, %v392, 0
        %v436 = vsel %vm419, %v393, 0
        %v439 = vsel %vm419, %v394, 0
        %v442 = vsel %vm419, %v395, 0
        %v445 = vsel %vm419, %v396, 0
        %v448 = vsel %vm419, %v397, 0
        %v451 = vsel %vm419, %v398, 0
        %v454 = vsel %vm419, %v399, 0
        %v457 = vsel %vm419, %v400, 0
        %v460 = vsel %vm419, %v401, 0
        %v463 = vsel %vm419, %v402, 0
        %v466 = vsel %vm419, %v403, 0
        %vm468 = vcmask 1041408
        %v470 = vsel %vm468, %v416, 0
        %472 = vmatprep.subr.bf16.mxu0 0
        %473 = vmatpush1.bf16.msra.mxu0 0
        %474 = vmatprep.subr.bf16.mxu0 0
        %475 = vmatpush1.bf16.msra.mxu0 0
        %476 = vmatprep.subr.bf16.mxu0 0
        %477 = vmatpush1.bf16.msra.mxu0 0
        %478 = vmatprep.subr.bf16.mxu0 0
        %479 = vmatpush1.bf16.msra.mxu0 0
        %480 = vmatprep.subr.bf16.mxu0 0
        %481 = vmatpush1.bf16.msra.mxu0 0
        %482 = vmatprep.subr.bf16.mxu0 0
        %483 = vmatpush1.bf16.msra.mxu0 %v470
        %484 = vmatprep.subr.bf16.mxu0 0
        %485 = vmatpush1.bf16.msra.mxu0 %v415
        %486 = vmatprep.subr.bf16.mxu0 0
        %487 = vmatpush1.bf16.msra.mxu0 %v414
        %488 = vmatprep.subr.bf16.mxu0 0
        %489 = vmatpush2.bf16.msra.mxu0 0
        %490 = vmatprep.subr.bf16.mxu0 0
        %491 = vmatpush2.bf16.msra.mxu0 0
        %492 = vmatprep.subr.bf16.mxu0 0
        %493 = vmatpush2.bf16.msra.mxu0 0
        %494 = vmatprep.subr.bf16.mxu0 0
        %495 = vmatpush2.bf16.msra.mxu0 0
        %496 = vmatprep.subr.bf16.mxu0 0
        %497 = vmatpush2.bf16.msra.mxu0 0
        %498 = vmatprep.subr.bf16.mxu0 0
        %499 = vmatpush2.bf16.msra.mxu0 0
        %500 = vmatprep.subr.bf16.mxu0 0
        %501 = vmatpush2.bf16.msra.mxu0 0
        %502 = vmatprep.subr.bf16.mxu0 0
        %503 = vmatpush2.bf16.msra.mxu0 0
        %504 = vmatprep.mubr.bf16.mxu0 0
        %505 = vmatmul.mubr.bf16.gmra.mxu0 %v421
        %v506 = vpop.f32.mrf.mxu0
        %v507 = vadd.f32 %v322, %v506
        %v508 = vpop.f32.mrf.mxu0
        %v509 = vpop.f32.mrf.mxu0
        %v510 = vadd.f32 %v322, %v509
        %v511 = vpop.f32.mrf.mxu0
        %512 = vmatprep.mubr.bf16.mxu0 0
        %513 = vmatmul.mubr.bf16.gmra.mxu0 %v424
        %v514 = vpop.f32.mrf.mxu0
        %v515 = vadd.f32 %v322, %v514
        %v516 = vpop.f32.mrf.mxu0
        %v517 = vpop.f32.mrf.mxu0
        %v518 = vadd.f32 %v322, %v517
        %v519 = vpop.f32.mrf.mxu0
        %520 = vmatprep.mubr.bf16.mxu0 0
        %521 = vmatmul.mubr.bf16.gmra.mxu0 %v427
        %v522 = vpop.f32.mrf.mxu0
        %v523 = vadd.f32 %v322, %v522
        %v524 = vpop.f32.mrf.mxu0
        %v525 = vpop.f32.mrf.mxu0
        %v526 = vadd.f32 %v322, %v525
        %v527 = vpop.f32.mrf.mxu0
        %528 = vmatprep.mubr.bf16.mxu0 0
        %529 = vmatmul.mubr.bf16.gmra.mxu0 %v430
        %v530 = vpop.f32.mrf.mxu0
        %v531 = vadd.f32 %v322, %v530
        %v532 = vpop.f32.mrf.mxu0
        %v533 = vpop.f32.mrf.mxu0
        %v534 = vadd.f32 %v322, %v533
        %v535 = vpop.f32.mrf.mxu0
        %536 = vmatprep.mubr.bf16.mxu0 0
        %537 = vmatmul.mubr.bf16.gmra.mxu0 %v433
        %v538 = vpop.f32.mrf.mxu0
        %v539 = vadd.f32 %v322, %v538
        %v540 = vpop.f32.mrf.mxu0
        %v541 = vpop.f32.mrf.mxu0
        %v542 = vadd.f32 %v322, %v541
        %v543 = vpop.f32.mrf.mxu0
        %544 = vmatprep.mubr.bf16.mxu0 0
        %545 = vmatmul.mubr.bf16.gmra.mxu0 %v436
        %v546 = vpop.f32.mrf.mxu0
        %v547 = vadd.f32 %v322, %v546
        %v548 = vpop.f32.mrf.mxu0
        %v549 = vpop.f32.mrf.mxu0
        %v550 = vadd.f32 %v322, %v549
        %v551 = vpop.f32.mrf.mxu0
        %552 = vmatprep.mubr.bf16.mxu0 0
        %553 = vmatmul.mubr.bf16.gmra.mxu0 %v439
        %v554 = vpop.f32.mrf.mxu0
        %v555 = vadd.f32 %v322, %v554
        %v556 = vpop.f32.mrf.mxu0
        %v557 = vpop.f32.mrf.mxu0
        %v558 = vadd.f32 %v322, %v557
        %v559 = vpop.f32.mrf.mxu0
        %560 = vmatprep.mubr.bf16.mxu0 0
        %561 = vmatmul.mubr.bf16.gmra.mxu0 %v442
        %v562 = vpop.f32.mrf.mxu0
        %v563 = vadd.f32 %v322, %v562
        %v564 = vpop.f32.mrf.mxu0
        %v565 = vpop.f32.mrf.mxu0
        %v566 = vadd.f32 %v322, %v565
        %v567 = vpop.f32.mrf.mxu0
        %568 = vmatprep.mubr.bf16.mxu0 0
        %569 = vmatmul.mubr.bf16.gmra.mxu0 %v445
        %v570 = vpop.f32.mrf.mxu0
        %v571 = vadd.f32 %v322, %v570
        %v572 = vpop.f32.mrf.mxu0
        %v573 = vpop.f32.mrf.mxu0
        %v574 = vadd.f32 %v322, %v573
        %v575 = vpop.f32.mrf.mxu0
        %576 = vmatprep.mubr.bf16.mxu0 0
        %577 = vmatmul.mubr.bf16.gmra.mxu0 %v448
        %v578 = vpop.f32.mrf.mxu0
        %v579 = vadd.f32 %v322, %v578
        %v580 = vpop.f32.mrf.mxu0
        %v581 = vpop.f32.mrf.mxu0
        %v582 = vadd.f32 %v322, %v581
        %v583 = vpop.f32.mrf.mxu0
        %584 = vmatprep.mubr.bf16.mxu0 0
        %585 = vmatmul.mubr.bf16.gmra.mxu0 %v451
        %v586 = vpop.f32.mrf.mxu0
        %v587 = vadd.f32 %v322, %v586
        %v588 = vpop.f32.mrf.mxu0
        %v589 = vpop.f32.mrf.mxu0
        %v590 = vadd.f32 %v322, %v589
        %v591 = vpop.f32.mrf.mxu0
        %592 = vmatprep.mubr.bf16.mxu0 0
        %593 = vmatmul.mubr.bf16.gmra.mxu0 %v454
        %v594 = vpop.f32.mrf.mxu0
        %v595 = vadd.f32 %v322, %v594
        %v596 = vpop.f32.mrf.mxu0
        %v597 = vpop.f32.mrf.mxu0
        %v598 = vadd.f32 %v322, %v597
        %v599 = vpop.f32.mrf.mxu0
        %600 = vmatprep.mubr.bf16.mxu0 0
        %601 = vmatmul.mubr.bf16.gmra.mxu0 %v457
        %v602 = vpop.f32.mrf.mxu0
        %v603 = vadd.f32 %v322, %v602
        %v604 = vpop.f32.mrf.mxu0
        %v605 = vpop.f32.mrf.mxu0
        %v606 = vadd.f32 %v322, %v605
        %v607 = vpop.f32.mrf.mxu0
        %608 = vmatprep.mubr.bf16.mxu0 0
        %609 = vmatmul.mubr.bf16.gmra.mxu0 %v460
        %v610 = vpop.f32.mrf.mxu0
        %v611 = vadd.f32 %v322, %v610
        %v612 = vpop.f32.mrf.mxu0
        %v613 = vpop.f32.mrf.mxu0
        %v614 = vadd.f32 %v322, %v613
        %v615 = vpop.f32.mrf.mxu0
        %616 = vmatprep.mubr.bf16.mxu0 0
        %617 = vmatmul.mubr.bf16.gmra.mxu0 %v463
        %v618 = vpop.f32.mrf.mxu0
        %v619 = vadd.f32 %v322, %v618
        %v620 = vpop.f32.mrf.mxu0
        %v621 = vpop.f32.mrf.mxu0
        %v622 = vadd.f32 %v322, %v621
        %v623 = vpop.f32.mrf.mxu0
        %624 = vmatprep.mubr.bf16.mxu0 0
        %625 = vmatmul.mubr.bf16.gmra.mxu0 %v466
        %v626 = vpop.f32.mrf.mxu0
        %v627 = vadd.f32 %v322, %v626
        %v628 = vpop.f32.mrf.mxu0
        %v629 = vpop.f32.mrf.mxu0
        %v630 = vadd.f32 %v322, %v629
        %v631 = vpop.f32.mrf.mxu0
        %632 = vdwg.mxu0
        %v633 = vpack.c.bf16 %v510, %v507
        %v634 = vpack.c.bf16 %v518, %v515
        %v635 = vpack.c.bf16 %v526, %v523
        %v636 = vpack.c.bf16 %v534, %v531
        %v637 = vpack.c.bf16 %v542, %v539
        %v638 = vpack.c.bf16 %v550, %v547
        %v639 = vpack.c.bf16 %v558, %v555
        %v640 = vpack.c.bf16 %v566, %v563
        %v641 = vpack.c.bf16 %v574, %v571
        %v642 = vpack.c.bf16 %v582, %v579
        %v643 = vpack.c.bf16 %v590, %v587
        %v644 = vpack.c.bf16 %v598, %v595
        %v645 = vpack.c.bf16 %v606, %v603
        %v646 = vpack.c.bf16 %v614, %v611
        %v647 = vpack.c.bf16 %v622, %v619
        %v648 = vpack.c.bf16 %v630, %v627
        %v649 = vld [vmem:[%s3] sm:$0xf]
        %v650 = vld [vmem:[%s3 + $0x4] sm:$0xf]
        %v651 = vld [vmem:[%s3 + $0x8] sm:$0xf]
        %v652 = vld [vmem:[%s3 + $0xc] sm:$0xf]
        %v653 = vld [vmem:[%s3 + $0x10] sm:$0xf]
        %v654 = vld [vmem:[%s3 + $0x14] sm:$0xf]
        %v655 = vld [vmem:[%s3 + $0x18] sm:$0xf]
        %v656 = vld [vmem:[%s3 + $0x1c] sm:$0xf]
        %v657 = vld [vmem:[%s3 + $0x20] sm:$0xf]
        %v658 = vld [vmem:[%s3 + $0x24] sm:$0xf]
        %v659 = vld [vmem:[%s3 + $0x28] sm:$0xf]
        %v660 = vld [vmem:[%s3 + $0x2c] sm:$0xf]
        %v661 = vld [vmem:[%s3 + $0x30] sm:$0xf]
        %v662 = vld [vmem:[%s3 + $0x34] sm:$0xf]
        %v663 = vld [vmem:[%s3 + $0x38] sm:$0xf]
        %v664 = vld [vmem:[%s3 + $0x3c] sm:$0xf]
        %v681 = vunpack.c.l.b16 %v649
        %v682 = vunpack.c.l.b16 %v650
        %v683 = vunpack.c.l.b16 %v651
        %v684 = vunpack.c.l.b16 %v652
        %v685 = vunpack.c.l.b16 %v653
        %v686 = vunpack.c.l.b16 %v654
        %v687 = vunpack.c.l.b16 %v655
        %v688 = vunpack.c.l.b16 %v656
        %v689 = vunpack.c.l.b16 %v657
        %v690 = vunpack.c.l.b16 %v658
        %v691 = vunpack.c.l.b16 %v659
        %v692 = vunpack.c.l.b16 %v660
        %v693 = vunpack.c.l.b16 %v661
        %v694 = vunpack.c.l.b16 %v662
        %v695 = vunpack.c.l.b16 %v663
        %v696 = vunpack.c.l.b16 %v664
        %v697 = vpack.c.b16 %v682, %v681
        %v698 = vpack.c.b16 %v684, %v683
        %v699 = vpack.c.b16 %v686, %v685
        %v700 = vpack.c.b16 %v688, %v687
        %v701 = vpack.c.b16 %v690, %v689
        %v702 = vpack.c.b16 %v692, %v691
        %v703 = vpack.c.b16 %v694, %v693
        %v704 = vpack.c.b16 %v696, %v695
        %713 = vmatprep.subr.bf16.mxu0 0
        %714 = vmatpush1.bf16.msra.mxu0 %v704
        %715 = vmatprep.subr.bf16.mxu0 0
        %716 = vmatpush1.bf16.msra.mxu0 %v703
        %717 = vmatprep.subr.bf16.mxu0 0
        %718 = vmatpush1.bf16.msra.mxu0 %v702
        %719 = vmatprep.subr.bf16.mxu0 0
        %720 = vmatpush1.bf16.msra.mxu0 %v701
        %721 = vmatprep.subr.bf16.mxu0 0
        %722 = vmatpush1.bf16.msra.mxu0 %v700
        %723 = vmatprep.subr.bf16.mxu0 0
        %724 = vmatpush1.bf16.msra.mxu0 %v699
        %725 = vmatprep.subr.bf16.mxu0 0
        %726 = vmatpush1.bf16.msra.mxu0 %v698
        %727 = vmatprep.subr.bf16.mxu0 0
        %728 = vmatpush1.bf16.msra.mxu0 %v697
        %729 = vmatprep.subr.bf16.mxu0 0
        %730 = vmatpush2.bf16.msra.mxu0 0
        %731 = vmatprep.subr.bf16.mxu0 0
        %732 = vmatpush2.bf16.msra.mxu0 0
        %733 = vmatprep.subr.bf16.mxu0 0
        %734 = vmatpush2.bf16.msra.mxu0 0
        %735 = vmatprep.subr.bf16.mxu0 0
        %736 = vmatpush2.bf16.msra.mxu0 0
        %737 = vmatprep.subr.bf16.mxu0 0
        %738 = vmatpush2.bf16.msra.mxu0 0
        %739 = vmatprep.subr.bf16.mxu0 0
        %740 = vmatpush2.bf16.msra.mxu0 0
        %741 = vmatprep.subr.bf16.mxu0 0
        %742 = vmatpush2.bf16.msra.mxu0 0
        %743 = vmatprep.subr.bf16.mxu0 0
        %744 = vmatpush2.bf16.msra.mxu0 0
        %745 = vmatprep.mubr.bf16.mxu0 0
        %746 = vmatmul.mubr.bf16.gmra.mxu0 %v633
        %v747 = vpop.f32.mrf.mxu0
        %v748 = vadd.f32 0.0, %v747
        %v749 = vpop.f32.mrf.mxu0
        %v750 = vpop.f32.mrf.mxu0
        %v751 = vadd.f32 0.0, %v750
        %v752 = vpop.f32.mrf.mxu0
        %753 = vmatprep.mubr.bf16.mxu0 0
        %754 = vmatmul.mubr.bf16.gmra.mxu0 %v634
        %v755 = vpop.f32.mrf.mxu0
        %v756 = vadd.f32 0.0, %v755
        %v757 = vpop.f32.mrf.mxu0
        %v758 = vpop.f32.mrf.mxu0
        %v759 = vadd.f32 0.0, %v758
        %v760 = vpop.f32.mrf.mxu0
        %761 = vmatprep.mubr.bf16.mxu0 0
        %762 = vmatmul.mubr.bf16.gmra.mxu0 %v635
        %v763 = vpop.f32.mrf.mxu0
        %v764 = vadd.f32 0.0, %v763
        %v765 = vpop.f32.mrf.mxu0
        %v766 = vpop.f32.mrf.mxu0
        %v767 = vadd.f32 0.0, %v766
        %v768 = vpop.f32.mrf.mxu0
        %769 = vmatprep.mubr.bf16.mxu0 0
        %770 = vmatmul.mubr.bf16.gmra.mxu0 %v636
        %v771 = vpop.f32.mrf.mxu0
        %v772 = vadd.f32 0.0, %v771
        %v773 = vpop.f32.mrf.mxu0
        %v774 = vpop.f32.mrf.mxu0
        %v775 = vadd.f32 0.0, %v774
        %v776 = vpop.f32.mrf.mxu0
        %777 = vmatprep.mubr.bf16.mxu0 0
        %778 = vmatmul.mubr.bf16.gmra.mxu0 %v637
        %v779 = vpop.f32.mrf.mxu0
        %v780 = vadd.f32 0.0, %v779
        %v781 = vpop.f32.mrf.mxu0
        %v782 = vpop.f32.mrf.mxu0
        %v783 = vadd.f32 0.0, %v782
        %v784 = vpop.f32.mrf.mxu0
        %785 = vmatprep.mubr.bf16.mxu0 0
        %786 = vmatmul.mubr.bf16.gmra.mxu0 %v638
        %v787 = vpop.f32.mrf.mxu0
        %v788 = vadd.f32 0.0, %v787
        %v789 = vpop.f32.mrf.mxu0
        %v790 = vpop.f32.mrf.mxu0
        %v791 = vadd.f32 0.0, %v790
        %v792 = vpop.f32.mrf.mxu0
        %793 = vmatprep.mubr.bf16.mxu0 0
        %794 = vmatmul.mubr.bf16.gmra.mxu0 %v639
        %v795 = vpop.f32.mrf.mxu0
        %v796 = vadd.f32 0.0, %v795
        %v797 = vpop.f32.mrf.mxu0
        %v798 = vpop.f32.mrf.mxu0
        %v799 = vadd.f32 0.0, %v798
        %v800 = vpop.f32.mrf.mxu0
        %801 = vmatprep.mubr.bf16.mxu0 0
        %802 = vmatmul.mubr.bf16.gmra.mxu0 %v640
        %v803 = vpop.f32.mrf.mxu0
        %v804 = vadd.f32 0.0, %v803
        %v805 = vpop.f32.mrf.mxu0
        %v806 = vpop.f32.mrf.mxu0
        %v807 = vadd.f32 0.0, %v806
        %v808 = vpop.f32.mrf.mxu0
        %809 = vmatprep.mubr.bf16.mxu0 0
        %810 = vmatmul.mubr.bf16.gmra.mxu0 %v641
        %v811 = vpop.f32.mrf.mxu0
        %v812 = vadd.f32 0.0, %v811
        %v813 = vpop.f32.mrf.mxu0
        %v814 = vpop.f32.mrf.mxu0
        %v815 = vadd.f32 0.0, %v814
        %v816 = vpop.f32.mrf.mxu0
        %817 = vmatprep.mubr.bf16.mxu0 0
        %818 = vmatmul.mubr.bf16.gmra.mxu0 %v642
        %v819 = vpop.f32.mrf.mxu0
        %v820 = vadd.f32 0.0, %v819
        %v821 = vpop.f32.mrf.mxu0
        %v822 = vpop.f32.mrf.mxu0
        %v823 = vadd.f32 0.0, %v822
        %v824 = vpop.f32.mrf.mxu0
        %825 = vmatprep.mubr.bf16.mxu0 0
        %826 = vmatmul.mubr.bf16.gmra.mxu0 %v643
        %v827 = vpop.f32.mrf.mxu0
        %v828 = vadd.f32 0.0, %v827
        %v829 = vpop.f32.mrf.mxu0
        %v830 = vpop.f32.mrf.mxu0
        %v831 = vadd.f32 0.0, %v830
        %v832 = vpop.f32.mrf.mxu0
        %833 = vmatprep.mubr.bf16.mxu0 0
        %834 = vmatmul.mubr.bf16.gmra.mxu0 %v644
        %v835 = vpop.f32.mrf.mxu0
        %v836 = vadd.f32 0.0, %v835
        %v837 = vpop.f32.mrf.mxu0
        %v838 = vpop.f32.mrf.mxu0
        %v839 = vadd.f32 0.0, %v838
        %v840 = vpop.f32.mrf.mxu0
        %841 = vmatprep.mubr.bf16.mxu0 0
        %842 = vmatmul.mubr.bf16.gmra.mxu0 %v645
        %v843 = vpop.f32.mrf.mxu0
        %v844 = vadd.f32 0.0, %v843
        %v845 = vpop.f32.mrf.mxu0
        %v846 = vpop.f32.mrf.mxu0
        %v847 = vadd.f32 0.0, %v846
        %v848 = vpop.f32.mrf.mxu0
        %849 = vmatprep.mubr.bf16.mxu0 0
        %850 = vmatmul.mubr.bf16.gmra.mxu0 %v646
        %v851 = vpop.f32.mrf.mxu0
        %v852 = vadd.f32 0.0, %v851
        %v853 = vpop.f32.mrf.mxu0
        %v854 = vpop.f32.mrf.mxu0
        %v855 = vadd.f32 0.0, %v854
        %v856 = vpop.f32.mrf.mxu0
        %857 = vmatprep.mubr.bf16.mxu0 0
        %858 = vmatmul.mubr.bf16.gmra.mxu0 %v647
        %v859 = vpop.f32.mrf.mxu0
        %v860 = vadd.f32 0.0, %v859
        %v861 = vpop.f32.mrf.mxu0
        %v862 = vpop.f32.mrf.mxu0
        %v863 = vadd.f32 0.0, %v862
        %v864 = vpop.f32.mrf.mxu0
        %865 = vmatprep.mubr.bf16.mxu0 0
        %866 = vmatmul.mubr.bf16.gmra.mxu0 %v648
        %v867 = vpop.f32.mrf.mxu0
        %v868 = vadd.f32 0.0, %v867
        %v869 = vpop.f32.mrf.mxu0
        %v870 = vpop.f32.mrf.mxu0
        %v871 = vadd.f32 0.0, %v870
        %v872 = vpop.f32.mrf.mxu0
        %873 = vdwg.mxu0
        %vm907 = vcmask 1040384
        %v908 = vrot.slane 0.0, 7
        %v909 = vsel %vm907, %v908, %v908
        %v910 = vrot.slane %v748, 7
        %v911 = vrot.slane %v751, 7
        %v912 = vsel %vm907, %v910, %v911
        %v913 = vrot.slane %v756, 7
        %v914 = vrot.slane %v759, 7
        %v915 = vsel %vm907, %v913, %v914
        %v916 = vrot.slane %v764, 7
        %v917 = vrot.slane %v767, 7
        %v918 = vsel %vm907, %v916, %v917
        %v919 = vrot.slane %v772, 7
        %v920 = vrot.slane %v775, 7
        %v921 = vsel %vm907, %v919, %v920
        %v922 = vrot.slane %v780, 7
        %v923 = vrot.slane %v783, 7
        %v924 = vsel %vm907, %v922, %v923
        %v925 = vrot.slane %v788, 7
        %v926 = vrot.slane %v791, 7
        %v927 = vsel %vm907, %v925, %v926
        %v928 = vrot.slane %v796, 7
        %v929 = vrot.slane %v799, 7
        %v930 = vsel %vm907, %v928, %v929
        %v931 = vrot.slane %v804, 7
        %v932 = vrot.slane %v807, 7
        %v933 = vsel %vm907, %v931, %v932
        %v934 = vrot.slane %v812, 7
        %v935 = vrot.slane %v815, 7
        %v936 = vsel %vm907, %v934, %v935
        %v937 = vrot.slane %v820, 7
        %v938 = vrot.slane %v823, 7
        %v939 = vsel %vm907, %v937, %v938
        %v940 = vrot.slane %v828, 7
        %v941 = vrot.slane %v831, 7
        %v942 = vsel %vm907, %v940, %v941
        %v943 = vrot.slane %v836, 7
        %v944 = vrot.slane %v839, 7
        %v945 = vsel %vm907, %v943, %v944
        %v946 = vrot.slane %v844, 7
        %v947 = vrot.slane %v847, 7
        %v948 = vsel %vm907, %v946, %v947
        %v949 = vrot.slane %v852, 7
        %v950 = vrot.slane %v855, 7
        %v951 = vsel %vm907, %v949, %v950
        %v952 = vrot.slane %v860, 7
        %v953 = vrot.slane %v863, 7
        %v954 = vsel %vm907, %v952, %v953
        %v955 = vrot.slane %v868, 7
        %v956 = vrot.slane %v871, 7
        %v957 = vsel %vm907, %v955, %v956
        %v1007 = vsel %vm907, 0.0, %v908
        %v1008 = vsel %vm907, 0.0, %v910
        %v1009 = vsel %vm907, 0.0, %v913
        %v1010 = vsel %vm907, 0.0, %v916
        %v1011 = vsel %vm907, 0.0, %v919
        %v1012 = vsel %vm907, 0.0, %v922
        %v1013 = vsel %vm907, 0.0, %v925
        %v1014 = vsel %vm907, 0.0, %v928
        %v1015 = vsel %vm907, 0.0, %v931
        %v1016 = vsel %vm907, 0.0, %v934
        %v1017 = vsel %vm907, 0.0, %v937
        %v1018 = vsel %vm907, 0.0, %v940
        %v1019 = vsel %vm907, 0.0, %v943
        %v1020 = vsel %vm907, 0.0, %v946
        %v1021 = vsel %vm907, 0.0, %v949
        %v1022 = vsel %vm907, 0.0, %v952
        %v1023 = vsel %vm907, 0.0, %v955
        %v1024 = vsel %vm907, %v908, 0.0
        %v1025 = vsel %vm907, %v911, 0.0
        %v1026 = vsel %vm907, %v914, 0.0
        %v1027 = vsel %vm907, %v917, 0.0
        %v1028 = vsel %vm907, %v920, 0.0
        %v1029 = vsel %vm907, %v923, 0.0
        %v1030 = vsel %vm907, %v926, 0.0
        %v1031 = vsel %vm907, %v929, 0.0
        %v1032 = vsel %vm907, %v932, 0.0
        %v1033 = vsel %vm907, %v935, 0.0
        %v1034 = vsel %vm907, %v938, 0.0
        %v1035 = vsel %vm907, %v941, 0.0
        %v1036 = vsel %vm907, %v944, 0.0
        %v1037 = vsel %vm907, %v947, 0.0
        %v1038 = vsel %vm907, %v950, 0.0
        %v1039 = vsel %vm907, %v953, 0.0
        %v1040 = vsel %vm907, %v956, 0.0
        %v1041 = vadd.f32 %v1007, 0.0
        %v1042 = vadd.f32 %v909, 0.0
        %v1043 = vadd.f32 %v1008, 0.0
        %v1044 = vadd.f32 %v912, 0.0
        %v1045 = vadd.f32 %v1009, 0.0
        %v1046 = vadd.f32 %v915, 0.0
        %v1047 = vadd.f32 %v1010, 0.0
        %v1048 = vadd.f32 %v918, 0.0
        %v1049 = vadd.f32 %v1011, 0.0
        %v1050 = vadd.f32 %v921, 0.0
        %v1051 = vadd.f32 %v1012, 0.0
        %v1052 = vadd.f32 %v924, 0.0
        %v1053 = vadd.f32 %v1013, 0.0
        %v1054 = vadd.f32 %v927, 0.0
        %v1055 = vadd.f32 %v1014, 0.0
        %v1056 = vadd.f32 %v930, 0.0
        %v1057 = vadd.f32 %v1015, 0.0
        %v1058 = vadd.f32 %v933, 0.0
        %v1059 = vadd.f32 %v1016, 0.0
        %v1060 = vadd.f32 %v936, 0.0
        %v1061 = vadd.f32 %v1017, 0.0
        %v1062 = vadd.f32 %v939, 0.0
        %v1063 = vadd.f32 %v1018, 0.0
        %v1064 = vadd.f32 %v942, 0.0
        %v1065 = vadd.f32 %v1019, 0.0
        %v1066 = vadd.f32 %v945, 0.0
        %v1067 = vadd.f32 %v1020, 0.0
        %v1068 = vadd.f32 %v948, 0.0
        %v1069 = vadd.f32 %v1021, 0.0
        %v1070 = vadd.f32 %v951, 0.0
        %v1071 = vadd.f32 %v1022, 0.0
        %v1072 = vadd.f32 %v954, 0.0
        %vm1105 = vcmask 1046528
        %v1106 = vrot.slane %v1007, 1
        %v1107 = vrot.slane %v909, 1
        %v1108 = vsel %vm1105, %v1106, %v1107
        %v1109 = vrot.slane %v1024, 1
        %v1110 = vsel %vm1105, %v1107, %v1109
        %v1111 = vrot.slane %v1008, 1
        %v1112 = vrot.slane %v912, 1
        %v1113 = vsel %vm1105, %v1111, %v1112
        %v1114 = vrot.slane %v1025, 1
        %v1115 = vsel %vm1105, %v1112, %v1114
        %v1116 = vrot.slane %v1009, 1
        %v1117 = vrot.slane %v915, 1
        %v1118 = vsel %vm1105, %v1116, %v1117
        %v1119 = vrot.slane %v1026, 1
        %v1120 = vsel %vm1105, %v1117, %v1119
        %v1121 = vrot.slane %v1010, 1
        %v1122 = vrot.slane %v918, 1
        %v1123 = vsel %vm1105, %v1121, %v1122
        %v1124 = vrot.slane %v1027, 1
        %v1125 = vsel %vm1105, %v1122, %v1124
        %v1126 = vrot.slane %v1011, 1
        %v1127 = vrot.slane %v921, 1
        %v1128 = vsel %vm1105, %v1126, %v1127
        %v1129 = vrot.slane %v1028, 1
        %v1130 = vsel %vm1105, %v1127, %v1129
        %v1131 = vrot.slane %v1012, 1
        %v1132 = vrot.slane %v924, 1
        %v1133 = vsel %vm1105, %v1131, %v1132
        %v1134 = vrot.slane %v1029, 1
        %v1135 = vsel %vm1105, %v1132, %v1134
        %v1136 = vrot.slane %v1013, 1
        %v1137 = vrot.slane %v927, 1
        %v1138 = vsel %vm1105, %v1136, %v1137
        %v1139 = vrot.slane %v1030, 1
        %v1140 = vsel %vm1105, %v1137, %v1139
        %v1141 = vrot.slane %v1014, 1
        %v1142 = vrot.slane %v930, 1
        %v1143 = vsel %vm1105, %v1141, %v1142
        %v1144 = vrot.slane %v1031, 1
        %v1145 = vsel %vm1105, %v1142, %v1144
        %v1146 = vrot.slane %v1015, 1
        %v1147 = vrot.slane %v933, 1
        %v1148 = vsel %vm1105, %v1146, %v1147
        %v1149 = vrot.slane %v1032, 1
        %v1150 = vsel %vm1105, %v1147, %v1149
        %v1151 = vrot.slane %v1016, 1
        %v1152 = vrot.slane %v936, 1
        %v1153 = vsel %vm1105, %v1151, %v1152
        %v1154 = vrot.slane %v1033, 1
        %v1155 = vsel %vm1105, %v1152, %v1154
        %v1156 = vrot.slane %v1017, 1
        %v1157 = vrot.slane %v939, 1
        %v1158 = vsel %vm1105, %v1156, %v1157
        %v1159 = vrot.slane %v1034, 1
        %v1160 = vsel %vm1105, %v1157, %v1159
        %v1161 = vrot.slane %v1018, 1
        %v1162 = vrot.slane %v942, 1
        %v1163 = vsel %vm1105, %v1161, %v1162
        %v1164 = vrot.slane %v1035, 1
        %v1165 = vsel %vm1105, %v1162, %v1164
        %v1166 = vrot.slane %v1019, 1
        %v1167 = vrot.slane %v945, 1
        %v1168 = vsel %vm1105, %v1166, %v1167
        %v1169 = vrot.slane %v1036, 1
        %v1170 = vsel %vm1105, %v1167, %v1169
        %v1171 = vrot.slane %v1020, 1
        %v1172 = vrot.slane %v948, 1
        %v1173 = vsel %vm1105, %v1171, %v1172
        %v1174 = vrot.slane %v1037, 1
        %v1175 = vsel %vm1105, %v1172, %v1174
        %v1176 = vrot.slane %v1021, 1
        %v1177 = vrot.slane %v951, 1
        %v1178 = vsel %vm1105, %v1176, %v1177
        %v1179 = vrot.slane %v1038, 1
        %v1180 = vsel %vm1105, %v1177, %v1179
        %v1181 = vrot.slane %v1022, 1
        %v1182 = vrot.slane %v954, 1
        %v1183 = vsel %vm1105, %v1181, %v1182
        %v1184 = vrot.slane %v1039, 1
        %v1185 = vsel %vm1105, %v1182, %v1184
        %1186 = vrot.lane.b32.xlu0 %v1108, 127
        %v1187 = vpop.permute.xlu0 %1186
        %1188 = vrot.lane.b32.xlu0 %v1110, 127
        %v1189 = vpop.permute.xlu0 %1188
        %1190 = vrot.lane.b32.xlu0 %v1113, 127
        %v1191 = vpop.permute.xlu0 %1190
        %1192 = vrot.lane.b32.xlu0 %v1115, 127
        %v1193 = vpop.permute.xlu0 %1192
        %1194 = vrot.lane.b32.xlu0 %v1118, 127
        %v1195 = vpop.permute.xlu0 %1194
        %1196 = vrot.lane.b32.xlu0 %v1120, 127
        %v1197 = vpop.permute.xlu0 %1196
        %1198 = vrot.lane.b32.xlu0 %v1123, 127
        %v1199 = vpop.permute.xlu0 %1198
        %1200 = vrot.lane.b32.xlu0 %v1125, 127
        %v1201 = vpop.permute.xlu0 %1200
        %1202 = vrot.lane.b32.xlu0 %v1128, 127
        %v1203 = vpop.permute.xlu0 %1202
        %1204 = vrot.lane.b32.xlu0 %v1130, 127
        %v1205 = vpop.permute.xlu0 %1204
        %1206 = vrot.lane.b32.xlu0 %v1133, 127
        %v1207 = vpop.permute.xlu0 %1206
        %1208 = vrot.lane.b32.xlu0 %v1135, 127
        %v1209 = vpop.permute.xlu0 %1208
        %1210 = vrot.lane.b32.xlu0 %v1138, 127
        %v1211 = vpop.permute.xlu0 %1210
        %1212 = vrot.lane.b32.xlu0 %v1140, 127
        %v1213 = vpop.permute.xlu0 %1212
        %1214 = vrot.lane.b32.xlu0 %v1143, 127
        %v1215 = vpop.permute.xlu0 %1214
        %1216 = vrot.lane.b32.xlu0 %v1145, 127
        %v1217 = vpop.permute.xlu0 %1216
        %1218 = vrot.lane.b32.xlu0 %v1148, 127
        %v1219 = vpop.permute.xlu0 %1218
        %1220 = vrot.lane.b32.xlu0 %v1150, 127
        %v1221 = vpop.permute.xlu0 %1220
        %1222 = vrot.lane.b32.xlu0 %v1153, 127
        %v1223 = vpop.permute.xlu0 %1222
        %1224 = vrot.lane.b32.xlu0 %v1155, 127
        %v1225 = vpop.permute.xlu0 %1224
        %1226 = vrot.lane.b32.xlu0 %v1158, 127
        %v1227 = vpop.permute.xlu0 %1226
        %1228 = vrot.lane.b32.xlu0 %v1160, 127
        %v1229 = vpop.permute.xlu0 %1228
        %1230 = vrot.lane.b32.xlu0 %v1163, 127
        %v1231 = vpop.permute.xlu0 %1230
        %1232 = vrot.lane.b32.xlu0 %v1165, 127
        %v1233 = vpop.permute.xlu0 %1232
        %1234 = vrot.lane.b32.xlu0 %v1168, 127
        %v1235 = vpop.permute.xlu0 %1234
        %1236 = vrot.lane.b32.xlu0 %v1170, 127
        %v1237 = vpop.permute.xlu0 %1236
        %1238 = vrot.lane.b32.xlu0 %v1173, 127
        %v1239 = vpop.permute.xlu0 %1238
        %1240 = vrot.lane.b32.xlu0 %v1175, 127
        %v1241 = vpop.permute.xlu0 %1240
        %1242 = vrot.lane.b32.xlu0 %v1178, 127
        %v1243 = vpop.permute.xlu0 %1242
        %1244 = vrot.lane.b32.xlu0 %v1180, 127
        %v1245 = vpop.permute.xlu0 %1244
        %1246 = vrot.lane.b32.xlu0 %v1183, 127
        %v1247 = vpop.permute.xlu0 %1246
        %1248 = vrot.lane.b32.xlu0 %v1185, 127
        %v1249 = vpop.permute.xlu0 %1248
        %v1282 = vadd.f32 %v1041, %v1187
        %v1283 = vadd.f32 %v1042, %v1189
        %v1284 = vadd.f32 %v1043, %v1191
        %v1285 = vadd.f32 %v1044, %v1193
        %v1286 = vadd.f32 %v1045, %v1195
        %v1287 = vadd.f32 %v1046, %v1197
        %v1288 = vadd.f32 %v1047, %v1199
        %v1289 = vadd.f32 %v1048, %v1201
        %v1290 = vadd.f32 %v1049, %v1203
        %v1291 = vadd.f32 %v1050, %v1205
        %v1292 = vadd.f32 %v1051, %v1207
        %v1293 = vadd.f32 %v1052, %v1209
        %v1294 = vadd.f32 %v1053, %v1211
        %v1295 = vadd.f32 %v1054, %v1213
        %v1296 = vadd.f32 %v1055, %v1215
        %v1297 = vadd.f32 %v1056, %v1217
        %v1298 = vadd.f32 %v1057, %v1219
        %v1299 = vadd.f32 %v1058, %v1221
        %v1300 = vadd.f32 %v1059, %v1223
        %v1301 = vadd.f32 %v1060, %v1225
        %v1302 = vadd.f32 %v1061, %v1227
        %v1303 = vadd.f32 %v1062, %v1229
        %v1304 = vadd.f32 %v1063, %v1231
        %v1305 = vadd.f32 %v1064, %v1233
        %v1306 = vadd.f32 %v1065, %v1235
        %v1307 = vadd.f32 %v1066, %v1237
        %v1308 = vadd.f32 %v1067, %v1239
        %v1309 = vadd.f32 %v1068, %v1241
        %v1310 = vadd.f32 %v1069, %v1243
        %v1311 = vadd.f32 %v1070, %v1245
        %v1312 = vadd.f32 %v1071, %v1247
        %v1313 = vadd.f32 %v1072, %v1249
        %vm1314 = vcmask 1045504
        %v1315 = vrot.slane %v1007, 2
        %v1316 = vrot.slane %v909, 2
        %v1317 = vsel %vm1314, %v1315, %v1316
        %v1318 = vrot.slane %v1024, 2
        %v1319 = vsel %vm1314, %v1316, %v1318
        %v1320 = vrot.slane %v1008, 2
        %v1321 = vrot.slane %v912, 2
        %v1322 = vsel %vm1314, %v1320, %v1321
        %v1323 = vrot.slane %v1025, 2
        %v1324 = vsel %vm1314, %v1321, %v1323
        %v1325 = vrot.slane %v1009, 2
        %v1326 = vrot.slane %v915, 2
        %v1327 = vsel %vm1314, %v1325, %v1326
        %v1328 = vrot.slane %v1026, 2
        %v1329 = vsel %vm1314, %v1326, %v1328
        %v1330 = vrot.slane %v1010, 2
        %v1331 = vrot.slane %v918, 2
        %v1332 = vsel %vm1314, %v1330, %v1331
        %v1333 = vrot.slane %v1027, 2
        %v1334 = vsel %vm1314, %v1331, %v1333
        %v1335 = vrot.slane %v1011, 2
        %v1336 = vrot.slane %v921, 2
        %v1337 = vsel %vm1314, %v1335, %v1336
        %v1338 = vrot.slane %v1028, 2
        %v1339 = vsel %vm1314, %v1336, %v1338
        %v1340 = vrot.slane %v1012, 2
        %v1341 = vrot.slane %v924, 2
        %v1342 = vsel %vm1314, %v1340, %v1341
        %v1343 = vrot.slane %v1029, 2
        %v1344 = vsel %vm1314, %v1341, %v1343
        %v1345 = vrot.slane %v1013, 2
        %v1346 = vrot.slane %v927, 2
        %v1347 = vsel %vm1314, %v1345, %v1346
        %v1348 = vrot.slane %v1030, 2
        %v1349 = vsel %vm1314, %v1346, %v1348
        %v1350 = vrot.slane %v1014, 2
        %v1351 = vrot.slane %v930, 2
        %v1352 = vsel %vm1314, %v1350, %v1351
        %v1353 = vrot.slane %v1031, 2
        %v1354 = vsel %vm1314, %v1351, %v1353
        %v1355 = vrot.slane %v1015, 2
        %v1356 = vrot.slane %v933, 2
        %v1357 = vsel %vm1314, %v1355, %v1356
        %v1358 = vrot.slane %v1032, 2
        %v1359 = vsel %vm1314, %v1356, %v1358
        %v1360 = vrot.slane %v1016, 2
        %v1361 = vrot.slane %v936, 2
        %v1362 = vsel %vm1314, %v1360, %v1361
        %v1363 = vrot.slane %v1033, 2
        %v1364 = vsel %vm1314, %v1361, %v1363
        %v1365 = vrot.slane %v1017, 2
        %v1366 = vrot.slane %v939, 2
        %v1367 = vsel %vm1314, %v1365, %v1366
        %v1368 = vrot.slane %v1034, 2
        %v1369 = vsel %vm1314, %v1366, %v1368
        %v1370 = vrot.slane %v1018, 2
        %v1371 = vrot.slane %v942, 2
        %v1372 = vsel %vm1314, %v1370, %v1371
        %v1373 = vrot.slane %v1035, 2
        %v1374 = vsel %vm1314, %v1371, %v1373
        %v1375 = vrot.slane %v1019, 2
        %v1376 = vrot.slane %v945, 2
        %v1377 = vsel %vm1314, %v1375, %v1376
        %v1378 = vrot.slane %v1036, 2
        %v1379 = vsel %vm1314, %v1376, %v1378
        %v1380 = vrot.slane %v1020, 2
        %v1381 = vrot.slane %v948, 2
        %v1382 = vsel %vm1314, %v1380, %v1381
        %v1383 = vrot.slane %v1037, 2
        %v1384 = vsel %vm1314, %v1381, %v1383
        %v1385 = vrot.slane %v1021, 2
        %v1386 = vrot.slane %v951, 2
        %v1387 = vsel %vm1314, %v1385, %v1386
        %v1388 = vrot.slane %v1038, 2
        %v1389 = vsel %vm1314, %v1386, %v1388
        %v1390 = vrot.slane %v1022, 2
        %v1391 = vrot.slane %v954, 2
        %v1392 = vsel %vm1314, %v1390, %v1391
        %v1393 = vrot.slane %v1039, 2
        %v1394 = vsel %vm1314, %v1391, %v1393
        %1395 = vrot.lane.b32.xlu0 %v1317, 126
        %v1396 = vpop.permute.xlu0 %1395
        %1397 = vrot.lane.b32.xlu0 %v1319, 126
        %v1398 = vpop.permute.xlu0 %1397
        %1399 = vrot.lane.b32.xlu0 %v1322, 126
        %v1400 = vpop.permute.xlu0 %1399
        %1401 = vrot.lane.b32.xlu0 %v1324, 126
        %v1402 = vpop.permute.xlu0 %1401
        %1403 = vrot.lane.b32.xlu0 %v1327, 126
        %v1404 = vpop.permute.xlu0 %1403
        %1405 = vrot.lane.b32.xlu0 %v1329, 126
        %v1406 = vpop.permute.xlu0 %1405
        %1407 = vrot.lane.b32.xlu0 %v1332, 126
        %v1408 = vpop.permute.xlu0 %1407
        %1409 = vrot.lane.b32.xlu0 %v1334, 126
        %v1410 = vpop.permute.xlu0 %1409
        %1411 = vrot.lane.b32.xlu0 %v1337, 126
        %v1412 = vpop.permute.xlu0 %1411
        %1413 = vrot.lane.b32.xlu0 %v1339, 126
        %v1414 = vpop.permute.xlu0 %1413
        %1415 = vrot.lane.b32.xlu0 %v1342, 126
        %v1416 = vpop.permute.xlu0 %1415
        %1417 = vrot.lane.b32.xlu0 %v1344, 126
        %v1418 = vpop.permute.xlu0 %1417
        %1419 = vrot.lane.b32.xlu0 %v1347, 126
        %v1420 = vpop.permute.xlu0 %1419
        %1421 = vrot.lane.b32.xlu0 %v1349, 126
        %v1422 = vpop.permute.xlu0 %1421
        %1423 = vrot.lane.b32.xlu0 %v1352, 126
        %v1424 = vpop.permute.xlu0 %1423
        %1425 = vrot.lane.b32.xlu0 %v1354, 126
        %v1426 = vpop.permute.xlu0 %1425
        %1427 = vrot.lane.b32.xlu0 %v1357, 126
        %v1428 = vpop.permute.xlu0 %1427
        %1429 = vrot.lane.b32.xlu0 %v1359, 126
        %v1430 = vpop.permute.xlu0 %1429
        %1431 = vrot.lane.b32.xlu0 %v1362, 126
        %v1432 = vpop.permute.xlu0 %1431
        %1433 = vrot.lane.b32.xlu0 %v1364, 126
        %v1434 = vpop.permute.xlu0 %1433
        %1435 = vrot.lane.b32.xlu0 %v1367, 126
        %v1436 = vpop.permute.xlu0 %1435
        %1437 = vrot.lane.b32.xlu0 %v1369, 126
        %v1438 = vpop.permute.xlu0 %1437
        %1439 = vrot.lane.b32.xlu0 %v1372, 126
        %v1440 = vpop.permute.xlu0 %1439
        %1441 = vrot.lane.b32.xlu0 %v1374, 126
        %v1442 = vpop.permute.xlu0 %1441
        %1443 = vrot.lane.b32.xlu0 %v1377, 126
        %v1444 = vpop.permute.xlu0 %1443
        %1445 = vrot.lane.b32.xlu0 %v1379, 126
        %v1446 = vpop.permute.xlu0 %1445
        %1447 = vrot.lane.b32.xlu0 %v1382, 126
        %v1448 = vpop.permute.xlu0 %1447
        %1449 = vrot.lane.b32.xlu0 %v1384, 126
        %v1450 = vpop.permute.xlu0 %1449
        %1451 = vrot.lane.b32.xlu0 %v1387, 126
        %v1452 = vpop.permute.xlu0 %1451
        %1453 = vrot.lane.b32.xlu0 %v1389, 126
        %v1454 = vpop.permute.xlu0 %1453
        %1455 = vrot.lane.b32.xlu0 %v1392, 126
        %v1456 = vpop.permute.xlu0 %1455
        %1457 = vrot.lane.b32.xlu0 %v1394, 126
        %v1458 = vpop.permute.xlu0 %1457
        %v1491 = vadd.f32 %v1282, %v1396
        %v1492 = vadd.f32 %v1283, %v1398
        %v1493 = vadd.f32 %v1284, %v1400
        %v1494 = vadd.f32 %v1285, %v1402
        %v1495 = vadd.f32 %v1286, %v1404
        %v1496 = vadd.f32 %v1287, %v1406
        %v1497 = vadd.f32 %v1288, %v1408
        %v1498 = vadd.f32 %v1289, %v1410
        %v1499 = vadd.f32 %v1290, %v1412
        %v1500 = vadd.f32 %v1291, %v1414
        %v1501 = vadd.f32 %v1292, %v1416
        %v1502 = vadd.f32 %v1293, %v1418
        %v1503 = vadd.f32 %v1294, %v1420
        %v1504 = vadd.f32 %v1295, %v1422
        %v1505 = vadd.f32 %v1296, %v1424
        %v1506 = vadd.f32 %v1297, %v1426
        %v1507 = vadd.f32 %v1298, %v1428
        %v1508 = vadd.f32 %v1299, %v1430
        %v1509 = vadd.f32 %v1300, %v1432
        %v1510 = vadd.f32 %v1301, %v1434
        %v1511 = vadd.f32 %v1302, %v1436
        %v1512 = vadd.f32 %v1303, %v1438
        %v1513 = vadd.f32 %v1304, %v1440
        %v1514 = vadd.f32 %v1305, %v1442
        %v1515 = vadd.f32 %v1306, %v1444
        %v1516 = vadd.f32 %v1307, %v1446
        %v1517 = vadd.f32 %v1308, %v1448
        %v1518 = vadd.f32 %v1309, %v1450
        %v1519 = vadd.f32 %v1310, %v1452
        %v1520 = vadd.f32 %v1311, %v1454
        %v1521 = vadd.f32 %v1312, %v1456
        %v1522 = vadd.f32 %v1313, %v1458
        %1524 = vrot.lane.b32.xlu0 %v1008, 125
        %v1525 = vpop.permute.xlu0 %1524
        %1526 = vrot.lane.b32.xlu0 %v912, 125
        %v1527 = vpop.permute.xlu0 %1526
        %1528 = vrot.lane.b32.xlu0 %v1009, 125
        %v1529 = vpop.permute.xlu0 %1528
        %1530 = vrot.lane.b32.xlu0 %v915, 125
        %v1531 = vpop.permute.xlu0 %1530
        %1532 = vrot.lane.b32.xlu0 %v1010, 125
        %v1533 = vpop.permute.xlu0 %1532
        %1534 = vrot.lane.b32.xlu0 %v918, 125
        %v1535 = vpop.permute.xlu0 %1534
        %1536 = vrot.lane.b32.xlu0 %v1011, 125
        %v1537 = vpop.permute.xlu0 %1536
        %1538 = vrot.lane.b32.xlu0 %v921, 125
        %v1539 = vpop.permute.xlu0 %1538
        %1540 = vrot.lane.b32.xlu0 %v1012, 125
        %v1541 = vpop.permute.xlu0 %1540
        %1542 = vrot.lane.b32.xlu0 %v924, 125
        %v1543 = vpop.permute.xlu0 %1542
        %1544 = vrot.lane.b32.xlu0 %v1013, 125
        %v1545 = vpop.permute.xlu0 %1544
        %1546 = vrot.lane.b32.xlu0 %v927, 125
        %v1547 = vpop.permute.xlu0 %1546
        %1548 = vrot.lane.b32.xlu0 %v1014, 125
        %v1549 = vpop.permute.xlu0 %1548
        %1550 = vrot.lane.b32.xlu0 %v930, 125
        %v1551 = vpop.permute.xlu0 %1550
        %1552 = vrot.lane.b32.xlu0 %v1015, 125
        %v1553 = vpop.permute.xlu0 %1552
        %1554 = vrot.lane.b32.xlu0 %v933, 125
        %v1555 = vpop.permute.xlu0 %1554
        %1556 = vrot.lane.b32.xlu0 %v1016, 125
        %v1557 = vpop.permute.xlu0 %1556
        %1558 = vrot.lane.b32.xlu0 %v936, 125
        %v1559 = vpop.permute.xlu0 %1558
        %1560 = vrot.lane.b32.xlu0 %v1017, 125
        %v1561 = vpop.permute.xlu0 %1560
        %1562 = vrot.lane.b32.xlu0 %v939, 125
        %v1563 = vpop.permute.xlu0 %1562
        %1564 = vrot.lane.b32.xlu0 %v1018, 125
        %v1565 = vpop.permute.xlu0 %1564
        %1566 = vrot.lane.b32.xlu0 %v942, 125
        %v1567 = vpop.permute.xlu0 %1566
        %1568 = vrot.lane.b32.xlu0 %v1019, 125
        %v1569 = vpop.permute.xlu0 %1568
        %1570 = vrot.lane.b32.xlu0 %v945, 125
        %v1571 = vpop.permute.xlu0 %1570
        %1572 = vrot.lane.b32.xlu0 %v1020, 125
        %v1573 = vpop.permute.xlu0 %1572
        %1574 = vrot.lane.b32.xlu0 %v948, 125
        %v1575 = vpop.permute.xlu0 %1574
        %1576 = vrot.lane.b32.xlu0 %v1021, 125
        %v1577 = vpop.permute.xlu0 %1576
        %1578 = vrot.lane.b32.xlu0 %v951, 125
        %v1579 = vpop.permute.xlu0 %1578
        %1580 = vrot.lane.b32.xlu0 %v1022, 125
        %v1581 = vpop.permute.xlu0 %1580
        %1582 = vrot.lane.b32.xlu0 %v954, 125
        %v1583 = vpop.permute.xlu0 %1582
        %1584 = vrot.lane.b32.xlu0 %v1023, 125
        %v1585 = vpop.permute.xlu0 %1584
        %1586 = vrot.lane.b32.xlu0 %v957, 125
        %v1587 = vpop.permute.xlu0 %1586
        %v1620 = vadd.f32 %v1491, %v1525
        %v1621 = vadd.f32 %v1492, %v1527
        %v1622 = vadd.f32 %v1493, %v1529
        %v1623 = vadd.f32 %v1494, %v1531
        %v1624 = vadd.f32 %v1495, %v1533
        %v1625 = vadd.f32 %v1496, %v1535
        %v1626 = vadd.f32 %v1497, %v1537
        %v1627 = vadd.f32 %v1498, %v1539
        %v1628 = vadd.f32 %v1499, %v1541
        %v1629 = vadd.f32 %v1500, %v1543
        %v1630 = vadd.f32 %v1501, %v1545
        %v1631 = vadd.f32 %v1502, %v1547
        %v1632 = vadd.f32 %v1503, %v1549
        %v1633 = vadd.f32 %v1504, %v1551
        %v1634 = vadd.f32 %v1505, %v1553
        %v1635 = vadd.f32 %v1506, %v1555
        %v1636 = vadd.f32 %v1507, %v1557
        %v1637 = vadd.f32 %v1508, %v1559
        %v1638 = vadd.f32 %v1509, %v1561
        %v1639 = vadd.f32 %v1510, %v1563
        %v1640 = vadd.f32 %v1511, %v1565
        %v1641 = vadd.f32 %v1512, %v1567
        %v1642 = vadd.f32 %v1513, %v1569
        %v1643 = vadd.f32 %v1514, %v1571
        %v1644 = vadd.f32 %v1515, %v1573
        %v1645 = vadd.f32 %v1516, %v1575
        %v1646 = vadd.f32 %v1517, %v1577
        %v1647 = vadd.f32 %v1518, %v1579
        %v1648 = vadd.f32 %v1519, %v1581
        %v1649 = vadd.f32 %v1520, %v1583
        %v1650 = vadd.f32 %v1521, %v1585
        %v1651 = vadd.f32 %v1522, %v1587
        %v1653 = vrot.slane %v1023, 1
        %v1654 = vrot.slane %v957, 1
        %v1655 = vsel %vm1105, %v1653, %v1654
        %v1656 = vrot.slane %v1040, 1
        %v1657 = vsel %vm1105, %v1654, %v1656
        %1658 = vrot.lane.b32.xlu0 %v1113, 124
        %v1659 = vpop.permute.xlu0 %1658
        %1660 = vrot.lane.b32.xlu0 %v1115, 124
        %v1661 = vpop.permute.xlu0 %1660
        %1662 = vrot.lane.b32.xlu0 %v1118, 124
        %v1663 = vpop.permute.xlu0 %1662
        %1664 = vrot.lane.b32.xlu0 %v1120, 124
        %v1665 = vpop.permute.xlu0 %1664
        %1666 = vrot.lane.b32.xlu0 %v1123, 124
        %v1667 = vpop.permute.xlu0 %1666
        %1668 = vrot.lane.b32.xlu0 %v1125, 124
        %v1669 = vpop.permute.xlu0 %1668
        %1670 = vrot.lane.b32.xlu0 %v1128, 124
        %v1671 = vpop.permute.xlu0 %1670
        %1672 = vrot.lane.b32.xlu0 %v1130, 124
        %v1673 = vpop.permute.xlu0 %1672
        %1674 = vrot.lane.b32.xlu0 %v1133, 124
        %v1675 = vpop.permute.xlu0 %1674
        %1676 = vrot.lane.b32.xlu0 %v1135, 124
        %v1677 = vpop.permute.xlu0 %1676
        %1678 = vrot.lane.b32.xlu0 %v1138, 124
        %v1679 = vpop.permute.xlu0 %1678
        %1680 = vrot.lane.b32.xlu0 %v1140, 124
        %v1681 = vpop.permute.xlu0 %1680
        %1682 = vrot.lane.b32.xlu0 %v1143, 124
        %v1683 = vpop.permute.xlu0 %1682
        %1684 = vrot.lane.b32.xlu0 %v1145, 124
        %v1685 = vpop.permute.xlu0 %1684
        %1686 = vrot.lane.b32.xlu0 %v1148, 124
        %v1687 = vpop.permute.xlu0 %1686
        %1688 = vrot.lane.b32.xlu0 %v1150, 124
        %v1689 = vpop.permute.xlu0 %1688
        %1690 = vrot.lane.b32.xlu0 %v1153, 124
        %v1691 = vpop.permute.xlu0 %1690
        %1692 = vrot.lane.b32.xlu0 %v1155, 124
        %v1693 = vpop.permute.xlu0 %1692
        %1694 = vrot.lane.b32.xlu0 %v1158, 124
        %v1695 = vpop.permute.xlu0 %1694
        %1696 = vrot.lane.b32.xlu0 %v1160, 124
        %v1697 = vpop.permute.xlu0 %1696
        %1698 = vrot.lane.b32.xlu0 %v1163, 124
        %v1699 = vpop.permute.xlu0 %1698
        %1700 = vrot.lane.b32.xlu0 %v1165, 124
        %v1701 = vpop.permute.xlu0 %1700
        %1702 = vrot.lane.b32.xlu0 %v1168, 124
        %v1703 = vpop.permute.xlu0 %1702
        %1704 = vrot.lane.b32.xlu0 %v1170, 124
        %v1705 = vpop.permute.xlu0 %1704
        %1706 = vrot.lane.b32.xlu0 %v1173, 124
        %v1707 = vpop.permute.xlu0 %1706
        %1708 = vrot.lane.b32.xlu0 %v1175, 124
        %v1709 = vpop.permute.xlu0 %1708
        %1710 = vrot.lane.b32.xlu0 %v1178, 124
        %v1711 = vpop.permute.xlu0 %1710
        %1712 = vrot.lane.b32.xlu0 %v1180, 124
        %v1713 = vpop.permute.xlu0 %1712
        %1714 = vrot.lane.b32.xlu0 %v1183, 124
        %v1715 = vpop.permute.xlu0 %1714
        %1716 = vrot.lane.b32.xlu0 %v1185, 124
        %v1717 = vpop.permute.xlu0 %1716
        %1718 = vrot.lane.b32.xlu0 %v1655, 124
        %v1719 = vpop.permute.xlu0 %1718
        %1720 = vrot.lane.b32.xlu0 %v1657, 124
        %v1721 = vpop.permute.xlu0 %1720
        %v1754 = vadd.f32 %v1620, %v1659
        %v1755 = vadd.f32 %v1621, %v1661
        %v1756 = vadd.f32 %v1622, %v1663
        %v1757 = vadd.f32 %v1623, %v1665
        %v1758 = vadd.f32 %v1624, %v1667
        %v1759 = vadd.f32 %v1625, %v1669
        %v1760 = vadd.f32 %v1626, %v1671
        %v1761 = vadd.f32 %v1627, %v1673
        %v1762 = vadd.f32 %v1628, %v1675
        %v1763 = vadd.f32 %v1629, %v1677
        %v1764 = vadd.f32 %v1630, %v1679
        %v1765 = vadd.f32 %v1631, %v1681
        %v1766 = vadd.f32 %v1632, %v1683
        %v1767 = vadd.f32 %v1633, %v1685
        %v1768 = vadd.f32 %v1634, %v1687
        %v1769 = vadd.f32 %v1635, %v1689
        %v1770 = vadd.f32 %v1636, %v1691
        %v1771 = vadd.f32 %v1637, %v1693
        %v1772 = vadd.f32 %v1638, %v1695
        %v1773 = vadd.f32 %v1639, %v1697
        %v1774 = vadd.f32 %v1640, %v1699
        %v1775 = vadd.f32 %v1641, %v1701
        %v1776 = vadd.f32 %v1642, %v1703
        %v1777 = vadd.f32 %v1643, %v1705
        %v1778 = vadd.f32 %v1644, %v1707
        %v1779 = vadd.f32 %v1645, %v1709
        %v1780 = vadd.f32 %v1646, %v1711
        %v1781 = vadd.f32 %v1647, %v1713
        %v1782 = vadd.f32 %v1648, %v1715
        %v1783 = vadd.f32 %v1649, %v1717
        %v1784 = vadd.f32 %v1650, %v1719
        %v1785 = vadd.f32 %v1651, %v1721
        %v1786 = vrot.slane %v1023, 2
        %v1787 = vrot.slane %v957, 2
        %v1788 = vsel %vm1314, %v1786, %v1787
        %v1789 = vrot.slane %v1040, 2
        %v1790 = vsel %vm1314, %v1787, %v1789
        %1791 = vrot.lane.b32.xlu0 %v1322, 123
        %v1792 = vpop.permute.xlu0 %1791
        %1793 = vrot.lane.b32.xlu0 %v1324, 123
        %v1794 = vpop.permute.xlu0 %1793
        %1795 = vrot.lane.b32.xlu0 %v1327, 123
        %v1796 = vpop.permute.xlu0 %1795
        %1797 = vrot.lane.b32.xlu0 %v1329, 123
        %v1798 = vpop.permute.xlu0 %1797
        %1799 = vrot.lane.b32.xlu0 %v1332, 123
        %v1800 = vpop.permute.xlu0 %1799
        %1801 = vrot.lane.b32.xlu0 %v1334, 123
        %v1802 = vpop.permute.xlu0 %1801
        %1803 = vrot.lane.b32.xlu0 %v1337, 123
        %v1804 = vpop.permute.xlu0 %1803
        %1805 = vrot.lane.b32.xlu0 %v1339, 123
        %v1806 = vpop.permute.xlu0 %1805
        %1807 = vrot.lane.b32.xlu0 %v1342, 123
        %v1808 = vpop.permute.xlu0 %1807
        %1809 = vrot.lane.b32.xlu0 %v1344, 123
        %v1810 = vpop.permute.xlu0 %1809
        %1811 = vrot.lane.b32.xlu0 %v1347, 123
        %v1812 = vpop.permute.xlu0 %1811
        %1813 = vrot.lane.b32.xlu0 %v1349, 123
        %v1814 = vpop.permute.xlu0 %1813
        %1815 = vrot.lane.b32.xlu0 %v1352, 123
        %v1816 = vpop.permute.xlu0 %1815
        %1817 = vrot.lane.b32.xlu0 %v1354, 123
        %v1818 = vpop.permute.xlu0 %1817
        %1819 = vrot.lane.b32.xlu0 %v1357, 123
        %v1820 = vpop.permute.xlu0 %1819
        %1821 = vrot.lane.b32.xlu0 %v1359, 123
        %v1822 = vpop.permute.xlu0 %1821
        %1823 = vrot.lane.b32.xlu0 %v1362, 123
        %v1824 = vpop.permute.xlu0 %1823
        %1825 = vrot.lane.b32.xlu0 %v1364, 123
        %v1826 = vpop.permute.xlu0 %1825
        %1827 = vrot.lane.b32.xlu0 %v1367, 123
        %v1828 = vpop.permute.xlu0 %1827
        %1829 = vrot.lane.b32.xlu0 %v1369, 123
        %v1830 = vpop.permute.xlu0 %1829
        %1831 = vrot.lane.b32.xlu0 %v1372, 123
        %v1832 = vpop.permute.xlu0 %1831
        %1833 = vrot.lane.b32.xlu0 %v1374, 123
        %v1834 = vpop.permute.xlu0 %1833
        %1835 = vrot.lane.b32.xlu0 %v1377, 123
        %v1836 = vpop.permute.xlu0 %1835
        %1837 = vrot.lane.b32.xlu0 %v1379, 123
        %v1838 = vpop.permute.xlu0 %1837
        %1839 = vrot.lane.b32.xlu0 %v1382, 123
        %v1840 = vpop.permute.xlu0 %1839
        %1841 = vrot.lane.b32.xlu0 %v1384, 123
        %v1842 = vpop.permute.xlu0 %1841
        %1843 = vrot.lane.b32.xlu0 %v1387, 123
        %v1844 = vpop.permute.xlu0 %1843
        %1845 = vrot.lane.b32.xlu0 %v1389, 123
        %v1846 = vpop.permute.xlu0 %1845
        %1847 = vrot.lane.b32.xlu0 %v1392, 123
        %v1848 = vpop.permute.xlu0 %1847
        %1849 = vrot.lane.b32.xlu0 %v1394, 123
        %v1850 = vpop.permute.xlu0 %1849
        %1851 = vrot.lane.b32.xlu0 %v1788, 123
        %v1852 = vpop.permute.xlu0 %1851
        %1853 = vrot.lane.b32.xlu0 %v1790, 123
        %v1854 = vpop.permute.xlu0 %1853
        %v1887 = vadd.f32 %v1754, %v1792
        %v1888 = vadd.f32 %v1755, %v1794
        %v1889 = vadd.f32 %v1756, %v1796
        %v1890 = vadd.f32 %v1757, %v1798
        %v1891 = vadd.f32 %v1758, %v1800
        %v1892 = vadd.f32 %v1759, %v1802
        %v1893 = vadd.f32 %v1760, %v1804
        %v1894 = vadd.f32 %v1761, %v1806
        %v1895 = vadd.f32 %v1762, %v1808
        %v1896 = vadd.f32 %v1763, %v1810
        %v1897 = vadd.f32 %v1764, %v1812
        %v1898 = vadd.f32 %v1765, %v1814
        %v1899 = vadd.f32 %v1766, %v1816
        %v1900 = vadd.f32 %v1767, %v1818
        %v1901 = vadd.f32 %v1768, %v1820
        %v1902 = vadd.f32 %v1769, %v1822
        %v1903 = vadd.f32 %v1770, %v1824
        %v1904 = vadd.f32 %v1771, %v1826
        %v1905 = vadd.f32 %v1772, %v1828
        %v1906 = vadd.f32 %v1773, %v1830
        %v1907 = vadd.f32 %v1774, %v1832
        %v1908 = vadd.f32 %v1775, %v1834
        %v1909 = vadd.f32 %v1776, %v1836
        %v1910 = vadd.f32 %v1777, %v1838
        %v1911 = vadd.f32 %v1778, %v1840
        %v1912 = vadd.f32 %v1779, %v1842
        %v1913 = vadd.f32 %v1780, %v1844
        %v1914 = vadd.f32 %v1781, %v1846
        %v1915 = vadd.f32 %v1782, %v1848
        %v1916 = vadd.f32 %v1783, %v1850
        %v1917 = vadd.f32 %v1784, %v1852
        %v1918 = vadd.f32 %v1785, %v1854
        %1919 = vrot.lane.b32.xlu0 %v1009, 122
        %v1920 = vpop.permute.xlu0 %1919
        %1921 = vrot.lane.b32.xlu0 %v915, 122
        %v1922 = vpop.permute.xlu0 %1921
        %1923 = vrot.lane.b32.xlu0 %v1010, 122
        %v1924 = vpop.permute.xlu0 %1923
        %1925 = vrot.lane.b32.xlu0 %v918, 122
        %v1926 = vpop.permute.xlu0 %1925
        %1927 = vrot.lane.b32.xlu0 %v1011, 122
        %v1928 = vpop.permute.xlu0 %1927
        %1929 = vrot.lane.b32.xlu0 %v921, 122
        %v1930 = vpop.permute.xlu0 %1929
        %1931 = vrot.lane.b32.xlu0 %v1012, 122
        %v1932 = vpop.permute.xlu0 %1931
        %1933 = vrot.lane.b32.xlu0 %v924, 122
        %v1934 = vpop.permute.xlu0 %1933
        %1935 = vrot.lane.b32.xlu0 %v1013, 122
        %v1936 = vpop.permute.xlu0 %1935
        %1937 = vrot.lane.b32.xlu0 %v927, 122
        %v1938 = vpop.permute.xlu0 %1937
        %1939 = vrot.lane.b32.xlu0 %v1014, 122
        %v1940 = vpop.permute.xlu0 %1939
        %1941 = vrot.lane.b32.xlu0 %v930, 122
        %v1942 = vpop.permute.xlu0 %1941
        %1943 = vrot.lane.b32.xlu0 %v1015, 122
        %v1944 = vpop.permute.xlu0 %1943
        %1945 = vrot.lane.b32.xlu0 %v933, 122
        %v1946 = vpop.permute.xlu0 %1945
        %1947 = vrot.lane.b32.xlu0 %v1016, 122
        %v1948 = vpop.permute.xlu0 %1947
        %1949 = vrot.lane.b32.xlu0 %v936, 122
        %v1950 = vpop.permute.xlu0 %1949
        %1951 = vrot.lane.b32.xlu0 %v1017, 122
        %v1952 = vpop.permute.xlu0 %1951
        %1953 = vrot.lane.b32.xlu0 %v939, 122
        %v1954 = vpop.permute.xlu0 %1953
        %1955 = vrot.lane.b32.xlu0 %v1018, 122
        %v1956 = vpop.permute.xlu0 %1955
        %1957 = vrot.lane.b32.xlu0 %v942, 122
        %v1958 = vpop.permute.xlu0 %1957
        %1959 = vrot.lane.b32.xlu0 %v1019, 122
        %v1960 = vpop.permute.xlu0 %1959
        %1961 = vrot.lane.b32.xlu0 %v945, 122
        %v1962 = vpop.permute.xlu0 %1961
        %1963 = vrot.lane.b32.xlu0 %v1020, 122
        %v1964 = vpop.permute.xlu0 %1963
        %1965 = vrot.lane.b32.xlu0 %v948, 122
        %v1966 = vpop.permute.xlu0 %1965
        %1967 = vrot.lane.b32.xlu0 %v1021, 122
        %v1968 = vpop.permute.xlu0 %1967
        %1969 = vrot.lane.b32.xlu0 %v951, 122
        %v1970 = vpop.permute.xlu0 %1969
        %1971 = vrot.lane.b32.xlu0 %v1022, 122
        %v1972 = vpop.permute.xlu0 %1971
        %1973 = vrot.lane.b32.xlu0 %v954, 122
        %v1974 = vpop.permute.xlu0 %1973
        %1975 = vrot.lane.b32.xlu0 %v1023, 122
        %v1976 = vpop.permute.xlu0 %1975
        %1977 = vrot.lane.b32.xlu0 %v957, 122
        %v1978 = vpop.permute.xlu0 %1977
        %1979 = vrot.lane.b32.xlu0 %v1007, 122
        %v1980 = vpop.permute.xlu0 %1979
        %1981 = vrot.lane.b32.xlu0 %v909, 122
        %v1982 = vpop.permute.xlu0 %1981
        %v2015 = vadd.f32 %v1887, %v1920
        %v2016 = vadd.f32 %v1888, %v1922
        %v2017 = vadd.f32 %v1889, %v1924
        %v2018 = vadd.f32 %v1890, %v1926
        %v2019 = vadd.f32 %v1891, %v1928
        %v2020 = vadd.f32 %v1892, %v1930
        %v2021 = vadd.f32 %v1893, %v1932
        %v2022 = vadd.f32 %v1894, %v1934
        %v2023 = vadd.f32 %v1895, %v1936
        %v2024 = vadd.f32 %v1896, %v1938
        %v2025 = vadd.f32 %v1897, %v1940
        %v2026 = vadd.f32 %v1898, %v1942
        %v2027 = vadd.f32 %v1899, %v1944
        %v2028 = vadd.f32 %v1900, %v1946
        %v2029 = vadd.f32 %v1901, %v1948
        %v2030 = vadd.f32 %v1902, %v1950
        %v2031 = vadd.f32 %v1903, %v1952
        %v2032 = vadd.f32 %v1904, %v1954
        %v2033 = vadd.f32 %v1905, %v1956
        %v2034 = vadd.f32 %v1906, %v1958
        %v2035 = vadd.f32 %v1907, %v1960
        %v2036 = vadd.f32 %v1908, %v1962
        %v2037 = vadd.f32 %v1909, %v1964
        %v2038 = vadd.f32 %v1910, %v1966
        %v2039 = vadd.f32 %v1911, %v1968
        %v2040 = vadd.f32 %v1912, %v1970
        %v2041 = vadd.f32 %v1913, %v1972
        %v2042 = vadd.f32 %v1914, %v1974
        %v2043 = vadd.f32 %v1915, %v1976
        %v2044 = vadd.f32 %v1916, %v1978
        %v2045 = vadd.f32 %v1917, %v1980
        %v2046 = vadd.f32 %v1918, %v1982
        %2047 = vrot.lane.b32.xlu0 %v1118, 121
        %v2048 = vpop.permute.xlu0 %2047
        %2049 = vrot.lane.b32.xlu0 %v1120, 121
        %v2050 = vpop.permute.xlu0 %2049
        %2051 = vrot.lane.b32.xlu0 %v1123, 121
        %v2052 = vpop.permute.xlu0 %2051
        %2053 = vrot.lane.b32.xlu0 %v1125, 121
        %v2054 = vpop.permute.xlu0 %2053
        %2055 = vrot.lane.b32.xlu0 %v1128, 121
        %v2056 = vpop.permute.xlu0 %2055
        %2057 = vrot.lane.b32.xlu0 %v1130, 121
        %v2058 = vpop.permute.xlu0 %2057
        %2059 = vrot.lane.b32.xlu0 %v1133, 121
        %v2060 = vpop.permute.xlu0 %2059
        %2061 = vrot.lane.b32.xlu0 %v1135, 121
        %v2062 = vpop.permute.xlu0 %2061
        %2063 = vrot.lane.b32.xlu0 %v1138, 121
        %v2064 = vpop.permute.xlu0 %2063
        %2065 = vrot.lane.b32.xlu0 %v1140, 121
        %v2066 = vpop.permute.xlu0 %2065
        %2067 = vrot.lane.b32.xlu0 %v1143, 121
        %v2068 = vpop.permute.xlu0 %2067
        %2069 = vrot.lane.b32.xlu0 %v1145, 121
        %v2070 = vpop.permute.xlu0 %2069
        %2071 = vrot.lane.b32.xlu0 %v1148, 121
        %v2072 = vpop.permute.xlu0 %2071
        %2073 = vrot.lane.b32.xlu0 %v1150, 121
        %v2074 = vpop.permute.xlu0 %2073
        %2075 = vrot.lane.b32.xlu0 %v1153, 121
        %v2076 = vpop.permute.xlu0 %2075
        %2077 = vrot.lane.b32.xlu0 %v1155, 121
        %v2078 = vpop.permute.xlu0 %2077
        %2079 = vrot.lane.b32.xlu0 %v1158, 121
        %v2080 = vpop.permute.xlu0 %2079
        %2081 = vrot.lane.b32.xlu0 %v1160, 121
        %v2082 = vpop.permute.xlu0 %2081
        %2083 = vrot.lane.b32.xlu0 %v1163, 121
        %v2084 = vpop.permute.xlu0 %2083
        %2085 = vrot.lane.b32.xlu0 %v1165, 121
        %v2086 = vpop.permute.xlu0 %2085
        %2087 = vrot.lane.b32.xlu0 %v1168, 121
        %v2088 = vpop.permute.xlu0 %2087
        %2089 = vrot.lane.b32.xlu0 %v1170, 121
        %v2090 = vpop.permute.xlu0 %2089
        %2091 = vrot.lane.b32.xlu0 %v1173, 121
        %v2092 = vpop.permute.xlu0 %2091
        %2093 = vrot.lane.b32.xlu0 %v1175, 121
        %v2094 = vpop.permute.xlu0 %2093
        %2095 = vrot.lane.b32.xlu0 %v1178, 121
        %v2096 = vpop.permute.xlu0 %2095
        %2097 = vrot.lane.b32.xlu0 %v1180, 121
        %v2098 = vpop.permute.xlu0 %2097
        %2099 = vrot.lane.b32.xlu0 %v1183, 121
        %v2100 = vpop.permute.xlu0 %2099
        %2101 = vrot.lane.b32.xlu0 %v1185, 121
        %v2102 = vpop.permute.xlu0 %2101
        %2103 = vrot.lane.b32.xlu0 %v1655, 121
        %v2104 = vpop.permute.xlu0 %2103
        %2105 = vrot.lane.b32.xlu0 %v1657, 121
        %v2106 = vpop.permute.xlu0 %2105
        %2107 = vrot.lane.b32.xlu0 %v1108, 121
        %v2108 = vpop.permute.xlu0 %2107
        %2109 = vrot.lane.b32.xlu0 %v1110, 121
        %v2110 = vpop.permute.xlu0 %2109
        %v2143 = vadd.f32 %v2015, %v2048
        %v2144 = vadd.f32 %v2016, %v2050
        %v2145 = vadd.f32 %v2017, %v2052
        %v2146 = vadd.f32 %v2018, %v2054
        %v2147 = vadd.f32 %v2019, %v2056
        %v2148 = vadd.f32 %v2020, %v2058
        %v2149 = vadd.f32 %v2021, %v2060
        %v2150 = vadd.f32 %v2022, %v2062
        %v2151 = vadd.f32 %v2023, %v2064
        %v2152 = vadd.f32 %v2024, %v2066
        %v2153 = vadd.f32 %v2025, %v2068
        %v2154 = vadd.f32 %v2026, %v2070
        %v2155 = vadd.f32 %v2027, %v2072
        %v2156 = vadd.f32 %v2028, %v2074
        %v2157 = vadd.f32 %v2029, %v2076
        %v2158 = vadd.f32 %v2030, %v2078
        %v2159 = vadd.f32 %v2031, %v2080
        %v2160 = vadd.f32 %v2032, %v2082
        %v2161 = vadd.f32 %v2033, %v2084
        %v2162 = vadd.f32 %v2034, %v2086
        %v2163 = vadd.f32 %v2035, %v2088
        %v2164 = vadd.f32 %v2036, %v2090
        %v2165 = vadd.f32 %v2037, %v2092
        %v2166 = vadd.f32 %v2038, %v2094
        %v2167 = vadd.f32 %v2039, %v2096
        %v2168 = vadd.f32 %v2040, %v2098
        %v2169 = vadd.f32 %v2041, %v2100
        %v2170 = vadd.f32 %v2042, %v2102
        %v2171 = vadd.f32 %v2043, %v2104
        %v2172 = vadd.f32 %v2044, %v2106
        %v2173 = vadd.f32 %v2045, %v2108
        %v2174 = vadd.f32 %v2046, %v2110
        %2175 = vrot.lane.b32.xlu0 %v1327, 120
        %v2176 = vpop.permute.xlu0 %2175
        %2177 = vrot.lane.b32.xlu0 %v1329, 120
        %v2178 = vpop.permute.xlu0 %2177
        %2179 = vrot.lane.b32.xlu0 %v1332, 120
        %v2180 = vpop.permute.xlu0 %2179
        %2181 = vrot.lane.b32.xlu0 %v1334, 120
        %v2182 = vpop.permute.xlu0 %2181
        %2183 = vrot.lane.b32.xlu0 %v1337, 120
        %v2184 = vpop.permute.xlu0 %2183
        %2185 = vrot.lane.b32.xlu0 %v1339, 120
        %v2186 = vpop.permute.xlu0 %2185
        %2187 = vrot.lane.b32.xlu0 %v1342, 120
        %v2188 = vpop.permute.xlu0 %2187
        %2189 = vrot.lane.b32.xlu0 %v1344, 120
        %v2190 = vpop.permute.xlu0 %2189
        %2191 = vrot.lane.b32.xlu0 %v1347, 120
        %v2192 = vpop.permute.xlu0 %2191
        %2193 = vrot.lane.b32.xlu0 %v1349, 120
        %v2194 = vpop.permute.xlu0 %2193
        %2195 = vrot.lane.b32.xlu0 %v1352, 120
        %v2196 = vpop.permute.xlu0 %2195
        %2197 = vrot.lane.b32.xlu0 %v1354, 120
        %v2198 = vpop.permute.xlu0 %2197
        %2199 = vrot.lane.b32.xlu0 %v1357, 120
        %v2200 = vpop.permute.xlu0 %2199
        %2201 = vrot.lane.b32.xlu0 %v1359, 120
        %v2202 = vpop.permute.xlu0 %2201
        %2203 = vrot.lane.b32.xlu0 %v1362, 120
        %v2204 = vpop.permute.xlu0 %2203
        %2205 = vrot.lane.b32.xlu0 %v1364, 120
        %v2206 = vpop.permute.xlu0 %2205
        %2207 = vrot.lane.b32.xlu0 %v1367, 120
        %v2208 = vpop.permute.xlu0 %2207
        %2209 = vrot.lane.b32.xlu0 %v1369, 120
        %v2210 = vpop.permute.xlu0 %2209
        %2211 = vrot.lane.b32.xlu0 %v1372, 120
        %v2212 = vpop.permute.xlu0 %2211
        %2213 = vrot.lane.b32.xlu0 %v1374, 120
        %v2214 = vpop.permute.xlu0 %2213
        %2215 = vrot.lane.b32.xlu0 %v1377, 120
        %v2216 = vpop.permute.xlu0 %2215
        %2217 = vrot.lane.b32.xlu0 %v1379, 120
        %v2218 = vpop.permute.xlu0 %2217
        %2219 = vrot.lane.b32.xlu0 %v1382, 120
        %v2220 = vpop.permute.xlu0 %2219
        %2221 = vrot.lane.b32.xlu0 %v1384, 120
        %v2222 = vpop.permute.xlu0 %2221
        %2223 = vrot.lane.b32.xlu0 %v1387, 120
        %v2224 = vpop.permute.xlu0 %2223
        %2225 = vrot.lane.b32.xlu0 %v1389, 120
        %v2226 = vpop.permute.xlu0 %2225
        %2227 = vrot.lane.b32.xlu0 %v1392, 120
        %v2228 = vpop.permute.xlu0 %2227
        %2229 = vrot.lane.b32.xlu0 %v1394, 120
        %v2230 = vpop.permute.xlu0 %2229
        %2231 = vrot.lane.b32.xlu0 %v1788, 120
        %v2232 = vpop.permute.xlu0 %2231
        %2233 = vrot.lane.b32.xlu0 %v1790, 120
        %v2234 = vpop.permute.xlu0 %2233
        %2235 = vrot.lane.b32.xlu0 %v1317, 120
        %v2236 = vpop.permute.xlu0 %2235
        %2237 = vrot.lane.b32.xlu0 %v1319, 120
        %v2238 = vpop.permute.xlu0 %2237
        %v2271 = vadd.f32 %v2143, %v2176
        %v2272 = vadd.f32 %v2144, %v2178
        %v2273 = vadd.f32 %v2145, %v2180
        %v2274 = vadd.f32 %v2146, %v2182
        %v2275 = vadd.f32 %v2147, %v2184
        %v2276 = vadd.f32 %v2148, %v2186
        %v2277 = vadd.f32 %v2149, %v2188
        %v2278 = vadd.f32 %v2150, %v2190
        %v2279 = vadd.f32 %v2151, %v2192
        %v2280 = vadd.f32 %v2152, %v2194
        %v2281 = vadd.f32 %v2153, %v2196
        %v2282 = vadd.f32 %v2154, %v2198
        %v2283 = vadd.f32 %v2155, %v2200
        %v2284 = vadd.f32 %v2156, %v2202
        %v2285 = vadd.f32 %v2157, %v2204
        %v2286 = vadd.f32 %v2158, %v2206
        %v2287 = vadd.f32 %v2159, %v2208
        %v2288 = vadd.f32 %v2160, %v2210
        %v2289 = vadd.f32 %v2161, %v2212
        %v2290 = vadd.f32 %v2162, %v2214
        %v2291 = vadd.f32 %v2163, %v2216
        %v2292 = vadd.f32 %v2164, %v2218
        %v2293 = vadd.f32 %v2165, %v2220
        %v2294 = vadd.f32 %v2166, %v2222
        %v2295 = vadd.f32 %v2167, %v2224
        %v2296 = vadd.f32 %v2168, %v2226
        %v2297 = vadd.f32 %v2169, %v2228
        %v2298 = vadd.f32 %v2170, %v2230
        %v2299 = vadd.f32 %v2171, %v2232
        %v2300 = vadd.f32 %v2172, %v2234
        %v2301 = vadd.f32 %v2173, %v2236
        %v2302 = vadd.f32 %v2174, %v2238
        %v2303 = vld [vmem:[#allocation2] sm:$0x1]
        %v2305 = vlaneseq
        %v2306 = vshrl.u32 %v2305, 7
        %v2307 = vsub.s32 0, %v2306
        %v2308 = vrot.slane %v2303, %v2307
        %2309 = vset.pattern.permute.xlu0 0
        %2310 = vperm.xlu0 %2309, %v2308
        %v2311 = vpop.permute.xlu0 %2310
        %v2313 = vadd.f32 %v2271, %v2311
        %v2314 = vadd.f32 %v2272, %v2311
        %v2315 = vadd.f32 %v2273, %v2311
        %v2316 = vadd.f32 %v2274, %v2311
        %v2317 = vadd.f32 %v2275, %v2311
        %v2318 = vadd.f32 %v2276, %v2311
        %v2319 = vadd.f32 %v2277, %v2311
        %v2320 = vadd.f32 %v2278, %v2311
        %v2321 = vadd.f32 %v2279, %v2311
        %v2322 = vadd.f32 %v2280, %v2311
        %v2323 = vadd.f32 %v2281, %v2311
        %v2324 = vadd.f32 %v2282, %v2311
        %v2325 = vadd.f32 %v2283, %v2311
        %v2326 = vadd.f32 %v2284, %v2311
        %v2327 = vadd.f32 %v2285, %v2311
        %v2328 = vadd.f32 %v2286, %v2311
        %v2329 = vadd.f32 %v2287, %v2311
        %v2330 = vadd.f32 %v2288, %v2311
        %v2331 = vadd.f32 %v2289, %v2311
        %v2332 = vadd.f32 %v2290, %v2311
        %v2333 = vadd.f32 %v2291, %v2311
        %v2334 = vadd.f32 %v2292, %v2311
        %v2335 = vadd.f32 %v2293, %v2311
        %v2336 = vadd.f32 %v2294, %v2311
        %v2337 = vadd.f32 %v2295, %v2311
        %v2338 = vadd.f32 %v2296, %v2311
        %v2339 = vadd.f32 %v2297, %v2311
        %v2340 = vadd.f32 %v2298, %v2311
        %v2341 = vadd.f32 %v2299, %v2311
        %v2342 = vadd.f32 %v2300, %v2311
        %v2343 = vadd.f32 %v2301, %v2311
        %v2344 = vadd.f32 %v2302, %v2311
        %v2345 = vpack.c.bf16 %v2314, %v2313
        %v2346 = vpack.c.bf16 %v2316, %v2315
        %v2347 = vpack.c.bf16 %v2318, %v2317
        %v2348 = vpack.c.bf16 %v2320, %v2319
        %v2349 = vpack.c.bf16 %v2322, %v2321
        %v2350 = vpack.c.bf16 %v2324, %v2323
        %v2351 = vpack.c.bf16 %v2326, %v2325
        %v2352 = vpack.c.bf16 %v2328, %v2327
        %v2353 = vpack.c.bf16 %v2330, %v2329
        %v2354 = vpack.c.bf16 %v2332, %v2331
        %v2355 = vpack.c.bf16 %v2334, %v2333
        %v2356 = vpack.c.bf16 %v2336, %v2335
        %v2357 = vpack.c.bf16 %v2338, %v2337
        %v2358 = vpack.c.bf16 %v2340, %v2339
        %v2359 = vpack.c.bf16 %v2342, %v2341
        %v2360 = vpack.c.bf16 %v2344, %v2343
        %v2361 = vld [vmem:[%s6] sm:$0xf]
        %v2362 = vld [vmem:[%s6 + $0x4] sm:$0xf]
        %v2379 = vunpack.c.l.b16 %v2345
        %v2380 = vunpack.c.h.b16 %v2345
        %v2381 = vunpack.c.l.b16 %v2346
        %v2382 = vunpack.c.h.b16 %v2346
        %v2383 = vunpack.c.l.b16 %v2347
        %v2384 = vunpack.c.h.b16 %v2347
        %v2385 = vunpack.c.l.b16 %v2348
        %v2386 = vunpack.c.h.b16 %v2348
        %v2387 = vunpack.c.l.b16 %v2349
        %v2388 = vunpack.c.h.b16 %v2349
        %v2389 = vunpack.c.l.b16 %v2350
        %v2390 = vunpack.c.h.b16 %v2350
        %v2391 = vunpack.c.l.b16 %v2351
        %v2392 = vunpack.c.h.b16 %v2351
        %v2393 = vunpack.c.l.b16 %v2352
        %v2394 = vunpack.c.h.b16 %v2352
        %v2395 = vunpack.c.l.b16 %v2353
        %v2396 = vunpack.c.h.b16 %v2353
        %v2397 = vunpack.c.l.b16 %v2354
        %v2398 = vunpack.c.h.b16 %v2354
        %v2399 = vunpack.c.l.b16 %v2355
        %v2400 = vunpack.c.h.b16 %v2355
        %v2401 = vunpack.c.l.b16 %v2356
        %v2402 = vunpack.c.h.b16 %v2356
        %v2403 = vunpack.c.l.b16 %v2357
        %v2404 = vunpack.c.h.b16 %v2357
        %v2405 = vunpack.c.l.b16 %v2358
        %v2406 = vunpack.c.h.b16 %v2358
        %v2407 = vunpack.c.l.b16 %v2359
        %v2408 = vunpack.c.h.b16 %v2359
        %v2409 = vunpack.c.l.b16 %v2360
        %v2410 = vunpack.c.h.b16 %v2360
        %2411 = vset.pattern.permute.xlu0 0
        %2412 = vperm.xlu0 %2411, %v2379
        %v2413 = vpop.permute.xlu0 %2412
        %2414 = vset.pattern.permute.xlu0 0
        %2415 = vperm.xlu0 %2414, %v2380
        %v2416 = vpop.permute.xlu0 %2415
        %2417 = vset.pattern.permute.xlu0 0
        %2418 = vperm.xlu0 %2417, %v2381
        %v2419 = vpop.permute.xlu0 %2418
        %2420 = vset.pattern.permute.xlu0 0
        %2421 = vperm.xlu0 %2420, %v2382
        %v2422 = vpop.permute.xlu0 %2421
        %2423 = vset.pattern.permute.xlu0 0
        %2424 = vperm.xlu0 %2423, %v2383
        %v2425 = vpop.permute.xlu0 %2424
        %2426 = vset.pattern.permute.xlu0 0
        %2427 = vperm.xlu0 %2426, %v2384
        %v2428 = vpop.permute.xlu0 %2427
        %2429 = vset.pattern.permute.xlu0 0
        %2430 = vperm.xlu0 %2429, %v2385
        %v2431 = vpop.permute.xlu0 %2430
        %2432 = vset.pattern.permute.xlu0 0
        %2433 = vperm.xlu0 %2432, %v2386
        %v2434 = vpop.permute.xlu0 %2433
        %2435 = vset.pattern.permute.xlu0 0
        %2436 = vperm.xlu0 %2435, %v2387
        %v2437 = vpop.permute.xlu0 %2436
        %2438 = vset.pattern.permute.xlu0 0
        %2439 = vperm.xlu0 %2438, %v2388
        %v2440 = vpop.permute.xlu0 %2439
        %2441 = vset.pattern.permute.xlu0 0
        %2442 = vperm.xlu0 %2441, %v2389
        %v2443 = vpop.permute.xlu0 %2442
        %2444 = vset.pattern.permute.xlu0 0
        %2445 = vperm.xlu0 %2444, %v2390
        %v2446 = vpop.permute.xlu0 %2445
        %2447 = vset.pattern.permute.xlu0 0
        %2448 = vperm.xlu0 %2447, %v2391
        %v2449 = vpop.permute.xlu0 %2448
        %2450 = vset.pattern.permute.xlu0 0
        %2451 = vperm.xlu0 %2450, %v2392
        %v2452 = vpop.permute.xlu0 %2451
        %2453 = vset.pattern.permute.xlu0 0
        %2454 = vperm.xlu0 %2453, %v2393
        %v2455 = vpop.permute.xlu0 %2454
        %2456 = vset.pattern.permute.xlu0 0
        %2457 = vperm.xlu0 %2456, %v2394
        %v2458 = vpop.permute.xlu0 %2457
        %2459 = vset.pattern.permute.xlu0 0
        %2460 = vperm.xlu0 %2459, %v2395
        %v2461 = vpop.permute.xlu0 %2460
        %2462 = vset.pattern.permute.xlu0 0
        %2463 = vperm.xlu0 %2462, %v2396
        %v2464 = vpop.permute.xlu0 %2463
        %2465 = vset.pattern.permute.xlu0 0
        %2466 = vperm.xlu0 %2465, %v2397
        %v2467 = vpop.permute.xlu0 %2466
        %2468 = vset.pattern.permute.xlu0 0
        %2469 = vperm.xlu0 %2468, %v2398
        %v2470 = vpop.permute.xlu0 %2469
        %2471 = vset.pattern.permute.xlu0 0
        %2472 = vperm.xlu0 %2471, %v2399
        %v2473 = vpop.permute.xlu0 %2472
        %2474 = vset.pattern.permute.xlu0 0
        %2475 = vperm.xlu0 %2474, %v2400
        %v2476 = vpop.permute.xlu0 %2475
        %2477 = vset.pattern.permute.xlu0 0
        %2478 = vperm.xlu0 %2477, %v2401
        %v2479 = vpop.permute.xlu0 %2478
        %2480 = vset.pattern.permute.xlu0 0
        %2481 = vperm.xlu0 %2480, %v2402
        %v2482 = vpop.permute.xlu0 %2481
        %2483 = vset.pattern.permute.xlu0 0
        %2484 = vperm.xlu0 %2483, %v2403
        %v2485 = vpop.permute.xlu0 %2484
        %2486 = vset.pattern.permute.xlu0 0
        %2487 = vperm.xlu0 %2486, %v2404
        %v2488 = vpop.permute.xlu0 %2487
        %2489 = vset.pattern.permute.xlu0 0
        %2490 = vperm.xlu0 %2489, %v2405
        %v2491 = vpop.permute.xlu0 %2490
        %2492 = vset.pattern.permute.xlu0 0
        %2493 = vperm.xlu0 %2492, %v2406
        %v2494 = vpop.permute.xlu0 %2493
        %2495 = vset.pattern.permute.xlu0 0
        %2496 = vperm.xlu0 %2495, %v2407
        %v2497 = vpop.permute.xlu0 %2496
        %2498 = vset.pattern.permute.xlu0 0
        %2499 = vperm.xlu0 %2498, %v2408
        %v2500 = vpop.permute.xlu0 %2499
        %2501 = vset.pattern.permute.xlu0 0
        %2502 = vperm.xlu0 %2501, %v2409
        %v2503 = vpop.permute.xlu0 %2502
        %2504 = vset.pattern.permute.xlu0 0
        %2505 = vperm.xlu0 %2504, %v2410
        %v2506 = vpop.permute.xlu0 %2505
        %v2507 = vlaneseq
        %v2508 = vand.u32 %v2507, 127
        %v2509 = vlaneseq
        %v2510 = vshrl.u32 %v2509, 7
        %v2511 = vsub.s32 %v2508, %v2510
        %v2512 = vrot.slane %v2413, %v2511
        %v2513 = vadd.s32 %v2508, 4294967288
        %v2514 = vlaneseq
        %v2515 = vshrl.u32 %v2514, 7
        %v2516 = vsub.s32 %v2513, %v2515
        %v2517 = vrot.slane %v2416, %v2516
        %vm2518 = vcmask 130112
        %v2519 = vsel %vm2518, %v2517, %v2512
        %v2520 = vlaneseq
        %v2521 = vshrl.u32 %v2520, 7
        %v2522 = vsub.s32 %v2508, %v2521
        %v2523 = vrot.slane %v2419, %v2522
        %v2524 = vlaneseq
        %v2525 = vshrl.u32 %v2524, 7
        %v2526 = vsub.s32 %v2513, %v2525
        %v2527 = vrot.slane %v2422, %v2526
        %v2528 = vsel %vm2518, %v2527, %v2523
        %v2529 = vlaneseq
        %v2530 = vshrl.u32 %v2529, 7
        %v2531 = vsub.s32 %v2508, %v2530
        %v2532 = vrot.slane %v2425, %v2531
        %v2533 = vlaneseq
        %v2534 = vshrl.u32 %v2533, 7
        %v2535 = vsub.s32 %v2513, %v2534
        %v2536 = vrot.slane %v2428, %v2535
        %v2537 = vsel %vm2518, %v2536, %v2532
        %v2538 = vlaneseq
        %v2539 = vshrl.u32 %v2538, 7
        %v2540 = vsub.s32 %v2508, %v2539
        %v2541 = vrot.slane %v2431, %v2540
        %v2542 = vlaneseq
        %v2543 = vshrl.u32 %v2542, 7
        %v2544 = vsub.s32 %v2513, %v2543
        %v2545 = vrot.slane %v2434, %v2544
        %v2546 = vsel %vm2518, %v2545, %v2541
        %v2547 = vlaneseq
        %v2548 = vshrl.u32 %v2547, 7
        %v2549 = vsub.s32 %v2508, %v2548
        %v2550 = vrot.slane %v2437, %v2549
        %v2551 = vlaneseq
        %v2552 = vshrl.u32 %v2551, 7
        %v2553 = vsub.s32 %v2513, %v2552
        %v2554 = vrot.slane %v2440, %v2553
        %v2555 = vsel %vm2518, %v2554, %v2550
        %v2556 = vlaneseq
        %v2557 = vshrl.u32 %v2556, 7
        %v2558 = vsub.s32 %v2508, %v2557
        %v2559 = vrot.slane %v2443, %v2558
        %v2560 = vlaneseq
        %v2561 = vshrl.u32 %v2560, 7
        %v2562 = vsub.s32 %v2513, %v2561
        %v2563 = vrot.slane %v2446, %v2562
        %v2564 = vsel %vm2518, %v2563, %v2559
        %v2565 = vlaneseq
        %v2566 = vshrl.u32 %v2565, 7
        %v2567 = vsub.s32 %v2508, %v2566
        %v2568 = vrot.slane %v2449, %v2567
        %v2569 = vlaneseq
        %v2570 = vshrl.u32 %v2569, 7
        %v2571 = vsub.s32 %v2513, %v2570
        %v2572 = vrot.slane %v2452, %v2571
        %v2573 = vsel %vm2518, %v2572, %v2568
        %v2574 = vlaneseq
        %v2575 = vshrl.u32 %v2574, 7
        %v2576 = vsub.s32 %v2508, %v2575
        %v2577 = vrot.slane %v2455, %v2576
        %v2578 = vlaneseq
        %v2579 = vshrl.u32 %v2578, 7
        %v2580 = vsub.s32 %v2513, %v2579
        %v2581 = vrot.slane %v2458, %v2580
        %v2582 = vsel %vm2518, %v2581, %v2577
        %v2583 = vlaneseq
        %v2584 = vshrl.u32 %v2583, 7
        %v2585 = vsub.s32 %v2508, %v2584
        %v2586 = vrot.slane %v2461, %v2585
        %v2587 = vlaneseq
        %v2588 = vshrl.u32 %v2587, 7
        %v2589 = vsub.s32 %v2513, %v2588
        %v2590 = vrot.slane %v2464, %v2589
        %v2591 = vsel %vm2518, %v2590, %v2586
        %v2592 = vlaneseq
        %v2593 = vshrl.u32 %v2592, 7
        %v2594 = vsub.s32 %v2508, %v2593
        %v2595 = vrot.slane %v2467, %v2594
        %v2596 = vlaneseq
        %v2597 = vshrl.u32 %v2596, 7
        %v2598 = vsub.s32 %v2513, %v2597
        %v2599 = vrot.slane %v2470, %v2598
        %v2600 = vsel %vm2518, %v2599, %v2595
        %v2601 = vlaneseq
        %v2602 = vshrl.u32 %v2601, 7
        %v2603 = vsub.s32 %v2508, %v2602
        %v2604 = vrot.slane %v2473, %v2603
        %v2605 = vlaneseq
        %v2606 = vshrl.u32 %v2605, 7
        %v2607 = vsub.s32 %v2513, %v2606
        %v2608 = vrot.slane %v2476, %v2607
        %v2609 = vsel %vm2518, %v2608, %v2604
        %v2610 = vlaneseq
        %v2611 = vshrl.u32 %v2610, 7
        %v2612 = vsub.s32 %v2508, %v2611
        %v2613 = vrot.slane %v2479, %v2612
        %v2614 = vlaneseq
        %v2615 = vshrl.u32 %v2614, 7
        %v2616 = vsub.s32 %v2513, %v2615
        %v2617 = vrot.slane %v2482, %v2616
        %v2618 = vsel %vm2518, %v2617, %v2613
        %v2619 = vlaneseq
        %v2620 = vshrl.u32 %v2619, 7
        %v2621 = vsub.s32 %v2508, %v2620
        %v2622 = vrot.slane %v2485, %v2621
        %v2623 = vlaneseq
        %v2624 = vshrl.u32 %v2623, 7
        %v2625 = vsub.s32 %v2513, %v2624
        %v2626 = vrot.slane %v2488, %v2625
        %v2627 = vsel %vm2518, %v2626, %v2622
        %v2628 = vlaneseq
        %v2629 = vshrl.u32 %v2628, 7
        %v2630 = vsub.s32 %v2508, %v2629
        %v2631 = vrot.slane %v2491, %v2630
        %v2632 = vlaneseq
        %v2633 = vshrl.u32 %v2632, 7
        %v2634 = vsub.s32 %v2513, %v2633
        %v2635 = vrot.slane %v2494, %v2634
        %v2636 = vsel %vm2518, %v2635, %v2631
        %v2637 = vlaneseq
        %v2638 = vshrl.u32 %v2637, 7
        %v2639 = vsub.s32 %v2508, %v2638
        %v2640 = vrot.slane %v2497, %v2639
        %v2641 = vlaneseq
        %v2642 = vshrl.u32 %v2641, 7
        %v2643 = vsub.s32 %v2513, %v2642
        %v2644 = vrot.slane %v2500, %v2643
        %v2645 = vsel %vm2518, %v2644, %v2640
        %v2646 = vlaneseq
        %v2647 = vshrl.u32 %v2646, 7
        %v2648 = vsub.s32 %v2508, %v2647
        %v2649 = vrot.slane %v2503, %v2648
        %v2650 = vlaneseq
        %v2651 = vshrl.u32 %v2650, 7
        %v2652 = vsub.s32 %v2513, %v2651
        %v2653 = vrot.slane %v2506, %v2652
        %v2654 = vsel %vm2518, %v2653, %v2649
        %vm2655 = vcmask 1041409
        %v2656 = vsel %vm2655, %v2528, %v2519
        %vm2657 = vcmask 1042434
        %v2658 = vsel %vm2657, %v2537, %v2656
        %vm2659 = vcmask 1043459
        %v2660 = vsel %vm2659, %v2546, %v2658
        %vm2661 = vcmask 1044484
        %v2662 = vsel %vm2661, %v2555, %v2660
        %vm2663 = vcmask 1045509
        %v2664 = vsel %vm2663, %v2564, %v2662
        %vm2665 = vcmask 1046534
        %v2666 = vsel %vm2665, %v2573, %v2664
        %vm2667 = vcmask 1047559
        %v2668 = vsel %vm2667, %v2582, %v2666
        %v2669 = vsel %vm2655, %v2600, %v2591
        %v2670 = vsel %vm2657, %v2609, %v2669
        %v2671 = vsel %vm2659, %v2618, %v2670
        %v2672 = vsel %vm2661, %v2627, %v2671
        %v2673 = vsel %vm2663, %v2636, %v2672
        %v2674 = vsel %vm2665, %v2645, %v2673
        %v2675 = vsel %vm2667, %v2654, %v2674
        %v2676 = vpack.c.b16 %v2675, %v2668
        %v2679 = vunpack.c.l.b16 %v2361
        %v2680 = vunpack.c.l.b16 %v2362
        %v2681 = vpack.c.b16 %v2680, %v2679
        %vm2683 = vcmask 130048
        %v2685 = vsel %vm2683, %v2676, 0
        %2687 = vmatprep.subr.bf16.mxu0 0
        %2688 = vmatpush1.bf16.msra.mxu0 0
        %2689 = vmatprep.subr.bf16.mxu0 0
        %2690 = vmatpush1.bf16.msra.mxu0 0
        %2691 = vmatprep.subr.bf16.mxu0 0
        %2692 = vmatpush1.bf16.msra.mxu0 0
        %2693 = vmatprep.subr.bf16.mxu0 0
        %2694 = vmatpush1.bf16.msra.mxu0 0
        %2695 = vmatprep.subr.bf16.mxu0 0
        %2696 = vmatpush1.bf16.msra.mxu0 0
        %2697 = vmatprep.subr.bf16.mxu0 0
        %2698 = vmatpush1.bf16.msra.mxu0 0
        %2699 = vmatprep.subr.bf16.mxu0 0
        %2700 = vmatpush1.bf16.msra.mxu0 0
        %2701 = vmatprep.subr.bf16.mxu0 0
        %2702 = vmatpush1.bf16.msra.mxu0 %v2681
        %2703 = vmatprep.subr.bf16.mxu0 0
        %2704 = vmatpush2.bf16.msra.mxu0 0
        %2705 = vmatprep.subr.bf16.mxu0 0
        %2706 = vmatpush2.bf16.msra.mxu0 0
        %2707 = vmatprep.subr.bf16.mxu0 0
        %2708 = vmatpush2.bf16.msra.mxu0 0
        %2709 = vmatprep.subr.bf16.mxu0 0
        %2710 = vmatpush2.bf16.msra.mxu0 0
        %2711 = vmatprep.subr.bf16.mxu0 0
        %2712 = vmatpush2.bf16.msra.mxu0 0
        %2713 = vmatprep.subr.bf16.mxu0 0
        %2714 = vmatpush2.bf16.msra.mxu0 0
        %2715 = vmatprep.subr.bf16.mxu0 0
        %2716 = vmatpush2.bf16.msra.mxu0 0
        %2717 = vmatprep.subr.bf16.mxu0 0
        %2718 = vmatpush2.bf16.msra.mxu0 0
        %2719 = vmatprep.mubr.bf16.mxu0 0
        %2720 = vmatmul.mubr.bf16.gmra.mxu0 %v2685
        %v2721 = vpop.f32.mrf.mxu0
        %v2722 = vadd.f32 0.0, %v2721
        %v2723 = vpop.f32.mrf.mxu0
        %v2724 = vpop.f32.mrf.mxu0
        %v2725 = vadd.f32 0.0, %v2724
        %v2726 = vpop.f32.mrf.mxu0
        %2727 = vdwg.mxu0
        %v2728 = vpack.c.bf16 %v2725, %v2722
        %v2729 = vld [vmem:[%s5] sm:$0xf]
        %v2730 = vld [vmem:[%s5 + $0x4] sm:$0xf]
        %v2731 = vld [vmem:[%s5 + $0x8] sm:$0xf]
        %v2732 = vld [vmem:[%s5 + $0xc] sm:$0xf]
        %v2737 = vunpack.c.l.b16 %v2729
        %v2738 = vunpack.c.l.b16 %v2730
        %v2739 = vunpack.c.l.b16 %v2731
        %v2740 = vunpack.c.l.b16 %v2732
        %v2741 = vpack.c.b16 %v2738, %v2737
        %v2742 = vpack.c.b16 %v2740, %v2739
        %v2744 = vsel %vm2683, %v2741, 0
        %v2747 = vsel %vm2683, %v2742, 0
        %2749 = vmatprep.subr.bf16.mxu0 0
        %2750 = vmatpush1.bf16.msra.mxu0 0
        %2751 = vmatprep.subr.bf16.mxu0 0
        %2752 = vmatpush1.bf16.msra.mxu0 0
        %2753 = vmatprep.subr.bf16.mxu0 0
        %2754 = vmatpush1.bf16.msra.mxu0 0
        %2755 = vmatprep.subr.bf16.mxu0 0
        %2756 = vmatpush1.bf16.msra.mxu0 0
        %2757 = vmatprep.subr.bf16.mxu0 0
        %2758 = vmatpush1.bf16.msra.mxu0 0
        %2759 = vmatprep.subr.bf16.mxu0 0
        %2760 = vmatpush1.bf16.msra.mxu0 0
        %2761 = vmatprep.subr.bf16.mxu0 0
        %2762 = vmatpush1.bf16.msra.mxu0 0
        %2763 = vmatprep.subr.bf16.mxu0 0
        %2764 = vmatpush1.bf16.msra.mxu0 %v2728
        %2765 = vmatprep.subr.bf16.mxu0 0
        %2766 = vmatpush2.bf16.msra.mxu0 0
        %2767 = vmatprep.subr.bf16.mxu0 0
        %2768 = vmatpush2.bf16.msra.mxu0 0
        %2769 = vmatprep.subr.bf16.mxu0 0
        %2770 = vmatpush2.bf16.msra.mxu0 0
        %2771 = vmatprep.subr.bf16.mxu0 0
        %2772 = vmatpush2.bf16.msra.mxu0 0
        %2773 = vmatprep.subr.bf16.mxu0 0
        %2774 = vmatpush2.bf16.msra.mxu0 0
        %2775 = vmatprep.subr.bf16.mxu0 0
        %2776 = vmatpush2.bf16.msra.mxu0 0
        %2777 = vmatprep.subr.bf16.mxu0 0
        %2778 = vmatpush2.bf16.msra.mxu0 0
        %2779 = vmatprep.subr.bf16.mxu0 0
        %2780 = vmatpush2.bf16.msra.mxu0 0
        %2781 = vmatprep.mubr.bf16.mxu0 0
        %2782 = vmatmul.mubr.bf16.gmra.mxu0 %v2744
        %v2783 = vpop.f32.mrf.mxu0
        %v2784 = vadd.f32 0.0, %v2783
        %v2785 = vpop.f32.mrf.mxu0
        %v2786 = vpop.f32.mrf.mxu0
        %v2787 = vadd.f32 0.0, %v2786
        %v2788 = vpop.f32.mrf.mxu0
        %2789 = vmatprep.mubr.bf16.mxu0 0
        %2790 = vmatmul.mubr.bf16.gmra.mxu0 %v2747
        %v2791 = vpop.f32.mrf.mxu0
        %v2792 = vadd.f32 0.0, %v2791
        %v2793 = vpop.f32.mrf.mxu0
        %v2794 = vpop.f32.mrf.mxu0
        %v2795 = vadd.f32 0.0, %v2794
        %v2796 = vpop.f32.mrf.mxu0
        %2797 = vdwg.mxu0
        %vm2798 = vcmask 261120
        %2799 = vst.msk [vmem:[%s273] sm:$0xff] %vm2798, %v2784
        %2800 = vst.msk [vmem:[%s273 + $0x8] sm:$0xff] %vm2798, %v2787
        %2801 = vst.msk [vmem:[%s273 + $0x10] sm:$0xff] %vm2798, %v2792
        %2802 = vst.msk [vmem:[%s273 + $0x18] sm:$0xff] %vm2798, %v2795
        %s2803 = sand.u32 %s183, 1
        %s2804 = scalar_lea.sflag [#allocation4], %s2803
        %s2805 = sand.u32 %s183, 1
        %s2806 = smul.addr %s2805, 32
        %s2807 = scalar_lea.vmem [#allocation3], %s2806
        // Predicated region
        $region49: #{output_conv_forward.1} parent=47 // pred_check
          %p2808 = pneg %p193
        $region50: #{output_conv_forward.1} parent=47 // pred_check_branch
          %2810 = sbr.rel (%p2808) target = $region52
        $region51: #{output_conv_forward.1} parent=47 // pred_region
          %s2812 = ssub.s32 512, 512
          %2813 = vsyncadd %s2804, %s2812
          %s2814 = smul.addr %s23, 4
          %s2815 = smul.addr %s2814, 128
          %s2816 = scalar_lea.hbm %s7, %s2815
          %s2817 = sshll.u32 %s2807, 4
          %s2818 = int_to_ptr.vmem [resolvable:$true] %s2817
          %2823 = dma.vmem_to_hbm [thread:$0]  %s2818, 512, %s2816, %s2804, 128, 128, 8
        $region52: #{output_conv_forward.1} parent=47 // pred_fallthru
          _
      $region48: #{output_conv_forward.1} parent=5 // pred_fallthru
        _
      %p2824 = scmp.le.s32.totalorder 2, %s18
      // Predicated region
      $region53: #{output_conv_forward.1} parent=5 // pred_check
        %p2825 = pneg %p2824
      $region54: #{output_conv_forward.1} parent=5 // pred_check_branch
        %2827 = sbr.rel (%p2825) target = $region56
      $region55: #{output_conv_forward.1} parent=5 // pred_region
        %s2828 = ssub.s32 %s18, 2
        // Predicated region
        $region57: #{output_conv_forward.1} parent=55 // pred_check
          %p2829 = pneg %p199
        $region58: #{output_conv_forward.1} parent=55 // pred_check_branch
          %2831 = sbr.rel (%p2829) target = $region60
        $region59: #{output_conv_forward.1} parent=55 // pred_region
          %s2832 = sand.u32 %s184, 1
          %s2833 = scalar_lea.sflag [#allocation4], %s2832
          %s2834 = sand.u32 %s184, 1
          %s2835 = smul.addr %s2834, 32
          %s2836 = scalar_lea.vmem [#allocation3], %s2835
          %2837 = dma.done %s2833, 512
        $region60: #{output_conv_forward.1} parent=55 // pred_fallthru
          _
      $region56: #{output_conv_forward.1} parent=5 // pred_fallthru
        _
    $region6: #{output_conv_forward.1} parent=1 // loop_footer
      %s22 = sadd.s32 1, %s18
    $region7: #{output_conv_forward.1} parent=1 // loop_footer_branch
      %17 = sbr.rel target = $region3
    $region8: #{output_conv_forward.1} parent=1 // loop_exit
      _
    %2838 = vsyncpa [#allocation4], 1
    %s2839 = scalar_lea.sflag [#allocation4], 1
    %2840 = vsyncpa %s2839, 1

</llo_original>
